<compile_context>
chip_gen: v7x
topology: tpu7x:2x2x1
jax: 0.10.0
libtpu: 0.0.40
codegen_flags: <defaults>
</compile_context>

<pallas_src>
import jax
import jax.numpy as jnp
from jax.experimental import pallas as pl
from jax.experimental.pallas import tpu as pltpu

EPS = 1e-5
_DEFAULT_TILE_ROWS = 512   # measured ~85% of HBM roofline for 512-row tiles


def _round_up(a, b):
    return (a + b - 1) // b * b


# ---------------------------------------------------------------------------
# Fused multi-pass kernel (Python loops unroll at trace time)
# ---------------------------------------------------------------------------
def _make_kernel(layer_num, tn, n_valid, n_pad):
    """Ref order: x, [wT_i, gb_i] * layer_num, wT_out, b_out, o, stat_0..stat_{L-1}."""
    n_tiles = n_pad // tn
    padded = (n_valid != n_pad)
    inv_n = 1.0 / float(n_valid)

    def kernel(*refs):
        x_ref = refs[0]
        w_refs = [refs[1 + 2 * i] for i in range(layer_num)]       # (Din, Dout) bf16
        gb_refs = [refs[2 + 2 * i] for i in range(layer_num)]      # (2, Dout) f32
        w_out_ref = refs[1 + 2 * layer_num]                        # (Dprev, Dlat) bf16
        b_out_ref = refs[2 + 2 * layer_num]                        # (1, Dlat) f32
        o_ref = refs[3 + 2 * layer_num]                            # (tn, Dlat) f32
        stat_refs = list(refs[4 + 2 * layer_num:])                 # per-layer (2, Dout)

        p = pl.program_id(0)   # pass index: 0..layer_num-1 = stats, layer_num = final
        t = pl.program_id(1)   # row-tile index

        # Row-validity mask doubles as the "ones" row of the MXU column sums, so BN
        # statistics never touch the XLU sublane-reduce path and ragged N is exact.
        if padded:
            row_ids = t * tn + jax.lax.broadcasted_iota(jnp.int32, (1, tn), 1)
            mask_row = (row_ids < n_valid).astype(jnp.float32)     # (1, tn)
        else:
            mask_row = jnp.ones((1, tn), jnp.float32)

        x = x_ref[...]   # native dtype; cast to bf16 right at the MXU

        def run_layers(upto):
            a = x
            for l in range(upto):
                y = jnp.dot(a.astype(jnp.bfloat16), w_refs[l][...],
                            preferred_element_type=jnp.float32)
                # stat_refs[l] holds the finalized [scale; shift] once pass l is done.
                y = y * stat_refs[l][0:1, :] + stat_refs[l][1:2, :]
                a = jnp.maximum(y, 0.0)
            return a

        # ---- stats passes: pass l accumulates layer l's column sum / sum-of-squares ----
        for l in range(layer_num):
            @pl.when(p == l)
            def _(l=l):
                a = run_layers(l)
                # Linear (bias dropped: a per-column constant cancels exactly in BN).
                y = jnp.dot(a.astype(jnp.bfloat16), w_refs[l][...],
                            preferred_element_type=jnp.float32)            # (tn, D_l)
                s1 = jnp.dot(mask_row, y, preferred_element_type=jnp.float32)       # (1, D_l)
                s2 = jnp.dot(mask_row, y * y, preferred_element_type=jnp.float32)   # (1, D_l)

                @pl.when(t == 0)
                def _():
                    stat_refs[l][...] = jnp.zeros_like(stat_refs[l])

                stat_refs[l][0:1, :] = stat_refs[l][0:1, :] + s1
                stat_refs[l][1:2, :] = stat_refs[l][1:2, :] + s2

                # Last tile of the pass: convert [sum; sumsq] -> BN affine [scale; shift].
                @pl.when(t == n_tiles - 1)
                def _():
                    mean = stat_refs[l][0:1, :] * inv_n
                    var = jnp.maximum(stat_refs[l][1:2, :] * inv_n - mean * mean, 0.0)
                    scale = gb_refs[l][0:1, :] * jax.lax.rsqrt(var + EPS)   # EUP rsqrt
                    shift = gb_refs[l][1:2, :] - mean * scale
                    stat_refs[l][0:1, :] = scale
                    stat_refs[l][1:2, :] = shift

        # ---- final pass: full forward with frozen BN affines + Linear + Sigmoid ----
        @pl.when(p == layer_num)
        def _():
            a = run_layers(layer_num)
            y = jnp.dot(a.astype(jnp.bfloat16), w_out_ref[...],
                        preferred_element_type=jnp.float32) + b_out_ref[...]
            o_ref[...] = jax.nn.sigmoid(y)

    return kernel


# ---------------------------------------------------------------------------
# One-time parameter packing (no per-call transpose / stack / cast)
# ---------------------------------------------------------------------------
def pack_z_estimator_params(params):
    packed = {"mlp": []}
    for layer in params["mlp"]:
        packed["mlp"].append({
            "w_t": jnp.asarray(layer["w"].T, jnp.bfloat16),                       # (Din, Dout)
            "gb": jnp.stack([layer["gamma"], layer["beta"]], 0).astype(jnp.float32),  # (2, Dout)
            # layer["b"] intentionally not packed: it cancels under training-mode BN.
        })
    packed["out"] = {
        "w_t": jnp.asarray(params["out"]["w"].T, jnp.bfloat16),                   # (Dprev, Dlat)
        "b": params["out"]["b"].reshape(1, -1).astype(jnp.float32),               # (1, Dlat)
    }
    return packed


# ---------------------------------------------------------------------------
# Forward wrapper: single pallas_call, batch-tiled pipelined grid
# ---------------------------------------------------------------------------
def z_estimator_forward(packed, x, tile_rows=_DEFAULT_TILE_ROWS):
    n, d_in = x.shape
    layer_num = len(packed["mlp"])
    dim_latent = packed["out"]["w_t"].shape[1]

    tn = min(tile_rows, _round_up(n, 8))           # block rows must be a multiple of 8
    n_pad = _round_up(n, tn)
    if n_pad != n:
        x = jnp.pad(x, ((0, n_pad - n), (0, 0)))   # padded rows masked out of BN stats
    n_tiles = n_pad // tn
    grid = (layer_num + 1, n_tiles)

    inputs = [x]
    in_specs = [pl.BlockSpec((tn, d_in), lambda p, t: (t, 0))]
    scratch = []
    for layer in packed["mlp"]:
        w_t, gb = layer["w_t"], layer["gb"]
        inputs += [w_t, gb]
        # Constant index maps: weights DMA'd once, VMEM-resident across all passes/tiles.
        in_specs += [pl.BlockSpec(w_t.shape, lambda p, t: (0, 0)),
                     pl.BlockSpec(gb.shape, lambda p, t: (0, 0))]
        scratch.append(pltpu.VMEM((2, w_t.shape[1]), jnp.float32))   # [sum;sumsq]->[scale;shift]

    w_out, b_out = packed["out"]["w_t"], packed["out"]["b"]
    inputs += [w_out, b_out]
    in_specs += [pl.BlockSpec(w_out.shape, lambda p, t: (0, 0)),
                 pl.BlockSpec(b_out.shape, lambda p, t: (0, 0))]

    last_pass = layer_num
    # Output block stays parked at block 0 during the stats passes (no spurious
    # writebacks) and only advances with the tile index in the final pass.
    out_spec = pl.BlockSpec((tn, dim_latent),
                            lambda p, t: (jnp.where(p == last_pass, t, 0), 0))

    # VMEM budget: double-buffered x/o tiles + resident weights + stats, with margin.
    est = 2 * tn * d_in * x.dtype.itemsize + 2 * tn * dim_latent * 4
    est += 2 * sum(int(a.size) * a.dtype.itemsize for a in inputs[1:])
    vmem_limit = int(min(48 * 2**20, max(16 * 2**20, 8 * est)))

    out = pl.pallas_call(
        _make_kernel(layer_num, tn, n, n_pad),
        out_shape=jax.ShapeDtypeStruct((n_pad, dim_latent), jnp.float32),
        grid=grid,
        in_specs=in_specs,
        out_specs=out_spec,
        scratch_shapes=scratch,
        compiler_params=pltpu.CompilerParams(
            # TODO(synk): v7x -> ("arbitrary", "parallel") + cross-core BN reduction.
            dimension_semantics=("arbitrary", "arbitrary"),
            vmem_limit_bytes=vmem_limit,
        ),
    )(*inputs)
    return out[:n] if n_pad != n else out


# ---------------------------------------------------------------------------
# Parameter construction (PyTorch layout: Linear weight is (Dout, Din))
# ---------------------------------------------------------------------------
def make_z_estimator_params(config, key):
    dim_in = config["or_dim_in"]
    dim_latent = config["generator_dim_latent"]
    dim_out = config["or_dim_out"]
    layer_num = config["generator_layer_num"]

    params = {"mlp": []}
    for i in range(layer_num):
        d_in = dim_in - (dim_in - dim_out) * i // layer_num
        d_out = dim_in - (dim_in - dim_out) * (i + 1) // layer_num
        key, kw, kb = jax.random.split(key, 3)
        params["mlp"].append({
            "w": 0.1 * jax.random.normal(kw, (d_out, d_in), jnp.float32),
            "b": 0.1 * jax.random.normal(kb, (d_out,), jnp.float32),
            "gamma": jnp.ones((d_out,), jnp.float32),   # BatchNorm1d affine defaults
            "beta": jnp.zeros((d_out,), jnp.float32),
        })
    key, kw, kb = jax.random.split(key, 3)
    params["out"] = {
        "w": 0.1 * jax.random.normal(kw, (dim_latent, dim_out), jnp.float32),
        "b": 0.1 * jax.random.normal(kb, (dim_latent,), jnp.float32),
    }
    return params


# ---------------------------------------------------------------------------
# Pure-JAX f32 reference (exact PyTorch semantics, bias included before BN)
# ---------------------------------------------------------------------------
def z_estimator_ref(params, x):
    x_rep = x.astype(jnp.float32)
    for layer in params["mlp"]:
        y = x_rep @ layer["w"].T + layer["b"]
        mu = jnp.mean(y, axis=0, keepdims=True)
        var = jnp.mean((y - mu) ** 2, axis=0, keepdims=True)
        y = (y - mu) * jax.lax.rsqrt(var + EPS) * layer["gamma"] + layer["beta"]
        x_rep = jnp.maximum(y, 0.0)
    return jax.nn.sigmoid(x_rep @ params["out"]["w"].T + params["out"]["b"])


if __name__ == "__main__":
    config = {
        "or_dim_in": 32,
        "generator_dim_latent": 16,
        "or_dim_out": 16,
        "generator_layer_num": 2,
    }

    key = jax.random.PRNGKey(0)
    key, kx, kp = jax.random.split(key, 3)
    params = make_z_estimator_params(config, kp)
    packed = pack_z_estimator_params(params)

    # Case 1: batch that tiles exactly.
    batch = 8
    x = jax.random.normal(kx, (batch, config["or_dim_in"]), jnp.float32)
    out = jax.block_until_ready(z_estimator_forward(packed, x))
    ref = z_estimator_ref(params, x)
    assert out.shape == (batch, config["generator_dim_latent"])
    # bf16 MXU operands -> loose tolerance (f32 reference path).
    assert jnp.allclose(out, ref, atol=2e-2, rtol=2e-2), "mismatch vs reference (batch=8)"

    # Case 2: ragged batch (exercises padding + masked BN statistics).
    key, kx2 = jax.random.split(key)
    x2 = jax.random.normal(kx2, (6, config["or_dim_in"]), jnp.float32)
    out2 = jax.block_until_ready(z_estimator_forward(packed, x2))
    ref2 = z_estimator_ref(params, x2)
    assert out2.shape == (6, config["generator_dim_latent"])
    assert jnp.allclose(out2, ref2, atol=2e-2, rtol=2e-2), "mismatch vs reference (batch=6)"

    print("KERNEL_OK")
</pallas_src>

<mosaic_0001>
module attributes {stable_mosaic.version = 11 : i64} {
  func.func @kernel(%arg0: i32, %arg1: i32, %arg2: memref<8x32xf32, #tpu.memory_space<vmem>>, %arg3: memref<32x24xbf16, #tpu.memory_space<vmem>>, %arg4: memref<2x24xf32, #tpu.memory_space<vmem>>, %arg5: memref<24x16xbf16, #tpu.memory_space<vmem>>, %arg6: memref<2x16xf32, #tpu.memory_space<vmem>>, %arg7: memref<16x16xbf16, #tpu.memory_space<vmem>>, %arg8: memref<1x16xf32, #tpu.memory_space<vmem>>, %arg9: memref<8x16xf32, #tpu.memory_space<vmem>>, %arg10: memref<2x24xf32, #tpu.memory_space<vmem>>, %arg11: memref<2x16xf32, #tpu.memory_space<vmem>>) attributes {dimension_semantics = [#tpu.dimension_semantics<arbitrary>, #tpu.dimension_semantics<arbitrary>], iteration_bounds = array<i64: 3, 1>, scalar_prefetch = 0 : i64, scratch_operands = 2 : i64, tpu.core_type = #tpu.core_type<tc>, window_params = [{transform_indices = @transform_0, window_bounds = array<i64: 8, 32>}, {pipeline_mode = #tpu.pipeline_mode<synchronous>, transform_indices = @transform_1, window_bounds = array<i64: 32, 24>}, {pipeline_mode = #tpu.pipeline_mode<synchronous>, transform_indices = @transform_2, window_bounds = array<i64: 2, 24>}, {pipeline_mode = #tpu.pipeline_mode<synchronous>, transform_indices = @transform_3, window_bounds = array<i64: 24, 16>}, {pipeline_mode = #tpu.pipeline_mode<synchronous>, transform_indices = @transform_4, window_bounds = array<i64: 2, 16>}, {pipeline_mode = #tpu.pipeline_mode<synchronous>, transform_indices = @transform_5, window_bounds = array<i64: 16, 16>}, {pipeline_mode = #tpu.pipeline_mode<synchronous>, transform_indices = @transform_6, window_bounds = array<i64: 1, 16>}, {transform_indices = @transform_7, window_bounds = array<i64: 8, 16>}]} {
    %cst = arith.constant 1.000000e+00 : f32
    %0 = vector.broadcast %cst : f32 to vector<1x8xf32>
    %c0 = arith.constant 0 : index
    %c0_0 = arith.constant 0 : index
    %1 = vector.load %arg2[%c0, %c0_0] : memref<8x32xf32, #tpu.memory_space<vmem>>, vector<8x32xf32>
    %c0_i32 = arith.constant 0 : i32
    %2 = arith.cmpi eq, %arg0, %c0_i32 : i32
    %3 = arith.extui %2 : i1 to i32
    %c0_i32_1 = arith.constant 0 : i32
    %4 = arith.cmpi ne, %3, %c0_i32_1 : i32
    scf.if %4 {
      %11 = arith.truncf %1 : vector<8x32xf32> to vector<8x32xbf16>
      %c0_4 = arith.constant 0 : index
      %c0_5 = arith.constant 0 : index
      %12 = vector.load %arg3[%c0_4, %c0_5] : memref<32x24xbf16, #tpu.memory_space<vmem>>, vector<32x24xbf16>
      %cst_6 = arith.constant dense<0.000000e+00> : vector<8x24xf32>
      %13 = tpu.matmul %11, %12, %cst_6 {dimension_numbers = #tpu.dot_dimension_numbers<[1], [0], [0], [1], [0, 0, 1, 1], [], []>} : vector<8x32xbf16>, vector<32x24xbf16>, vector<8x24xf32> -> vector<8x24xf32>
      %cst_7 = arith.constant dense<0.000000e+00> : vector<1x24xf32>
      %14 = tpu.matmul %0, %13, %cst_7 {dimension_numbers = #tpu.dot_dimension_numbers<[1], [0], [0], [1], [0, 0, 1, 1], [], []>} : vector<1x8xf32>, vector<8x24xf32>, vector<1x24xf32> -> vector<1x24xf32>
      %15 = arith.mulf %13, %13 : vector<8x24xf32>
      %cst_8 = arith.constant dense<0.000000e+00> : vector<1x24xf32>
      %16 = tpu.matmul %0, %15, %cst_8 {dimension_numbers = #tpu.dot_dimension_numbers<[1], [0], [0], [1], [0, 0, 1, 1], [], []>} : vector<1x8xf32>, vector<8x24xf32>, vector<1x24xf32> -> vector<1x24xf32>
      %c0_i32_9 = arith.constant 0 : i32
      %17 = arith.cmpi eq, %arg1, %c0_i32_9 : i32
      %18 = arith.extui %17 : i1 to i32
      %c0_i32_10 = arith.constant 0 : i32
      %19 = arith.cmpi ne, %18, %c0_i32_10 : i32
      scf.if %19 {
        %cst_20 = arith.constant 0.000000e+00 : f32
        %29 = vector.broadcast %cst_20 : f32 to vector<2x24xf32>
        %c0_21 = arith.constant 0 : index
        %c0_22 = arith.constant 0 : index
        %30 = vector.load %arg10[%c0_21, %c0_22] : memref<2x24xf32, #tpu.memory_space<vmem>>, vector<2x24xf32>
        tpu.vector_store %arg10[%c0_21, %c0_22], %29 {strides = array<i32>} : memref<2x24xf32, #tpu.memory_space<vmem>>, vector<2x24xf32>,
      } else {
      }
      %c0_11 = arith.constant 0 : index
      %c0_12 = arith.constant 0 : index
      %20 = vector.load %arg10[%c0_11, %c0_12] : memref<2x24xf32, #tpu.memory_space<vmem>>, vector<1x24xf32>
      %21 = arith.addf %20, %14 : vector<1x24xf32>
      %c0_13 = arith.constant 0 : index
      %c0_14 = arith.constant 0 : index
      %22 = vector.load %arg10[%c0_13, %c0_14] : memref<2x24xf32, #tpu.memory_space<vmem>>, vector<1x24xf32>
      tpu.vector_store %arg10[%c0_13, %c0_14], %21 {strides = array<i32>} : memref<2x24xf32, #tpu.memory_space<vmem>>, vector<1x24xf32>,
      %c1 = arith.constant 1 : index
      %c0_15 = arith.constant 0 : index
      %23 = vector.load %arg10[%c1, %c0_15] : memref<2x24xf32, #tpu.memory_space<vmem>>, vector<1x24xf32>
      %24 = arith.addf %23, %16 : vector<1x24xf32>
      %c1_16 = arith.constant 1 : index
      %c0_17 = arith.constant 0 : index
      %25 = vector.load %arg10[%c1_16, %c0_17] : memref<2x24xf32, #tpu.memory_space<vmem>>, vector<1x24xf32>
      tpu.vector_store %arg10[%c1_16, %c0_17], %24 {strides = array<i32>} : memref<2x24xf32, #tpu.memory_space<vmem>>, vector<1x24xf32>,
      %c0_i32_18 = arith.constant 0 : i32
      %26 = arith.cmpi eq, %arg1, %c0_i32_18 : i32
      %27 = arith.extui %26 : i1 to i32
      %c0_i32_19 = arith.constant 0 : i32
      %28 = arith.cmpi ne, %27, %c0_i32_19 : i32
      scf.if %28 {
        %c0_20 = arith.constant 0 : index
        %c0_21 = arith.constant 0 : index
        %29 = vector.load %arg10[%c0_20, %c0_21] : memref<2x24xf32, #tpu.memory_space<vmem>>, vector<1x24xf32>
        %cst_22 = arith.constant 1.250000e-01 : f32
        %30 = vector.broadcast %cst_22 : f32 to vector<1x24xf32>
        %31 = arith.mulf %29, %30 : vector<1x24xf32>
        %c1_23 = arith.constant 1 : index
        %c0_24 = arith.constant 0 : index
        %32 = vector.load %arg10[%c1_23, %c0_24] : memref<2x24xf32, #tpu.memory_space<vmem>>, vector<1x24xf32>
        %cst_25 = arith.constant 1.250000e-01 : f32
        %33 = vector.broadcast %cst_25 : f32 to vector<1x24xf32>
        %34 = arith.mulf %32, %33 : vector<1x24xf32>
        %35 = arith.mulf %31, %31 : vector<1x24xf32>
        %36 = arith.subf %34, %35 : vector<1x24xf32>
        %cst_26 = arith.constant 0.000000e+00 : f32
        %37 = vector.broadcast %cst_26 : f32 to vector<1x24xf32>
        %38 = arith.maximumf %36, %37 : vector<1x24xf32>
        %c0_27 = arith.constant 0 : index
        %c0_28 = arith.constant 0 : index
        %39 = vector.load %arg4[%c0_27, %c0_28] : memref<2x24xf32, #tpu.memory_space<vmem>>, vector<1x24xf32>
        %cst_29 = arith.constant 9.99999974E-6 : f32
        %40 = vector.broadcast %cst_29 : f32 to vector<1x24xf32>
        %41 = arith.addf %38, %40 : vector<1x24xf32>
        %42 = math.rsqrt %41 : vector<1x24xf32>
        %43 = arith.mulf %39, %42 : vector<1x24xf32>
        %c1_30 = arith.constant 1 : index
        %c0_31 = arith.constant 0 : index
        %44 = vector.load %arg4[%c1_30, %c0_31] : memref<2x24xf32, #tpu.memory_space<vmem>>, vector<1x24xf32>
        %45 = arith.mulf %31, %43 : vector<1x24xf32>
        %46 = arith.subf %44, %45 : vector<1x24xf32>
        %c0_32 = arith.constant 0 : index
        %c0_33 = arith.constant 0 : index
        %47 = vector.load %arg10[%c0_32, %c0_33] : memref<2x24xf32, #tpu.memory_space<vmem>>, vector<1x24xf32>
        tpu.vector_store %arg10[%c0_32, %c0_33], %43 {strides = array<i32>} : memref<2x24xf32, #tpu.memory_space<vmem>>, vector<1x24xf32>,
        %c1_34 = arith.constant 1 : index
        %c0_35 = arith.constant 0 : index
        %48 = vector.load %arg10[%c1_34, %c0_35] : memref<2x24xf32, #tpu.memory_space<vmem>>, vector<1x24xf32>
        tpu.vector_store %arg10[%c1_34, %c0_35], %46 {strides = array<i32>} : memref<2x24xf32, #tpu.memory_space<vmem>>, vector<1x24xf32>,
      } else {
      }
    } else {
    }
    %c1_i32 = arith.constant 1 : i32
    %5 = arith.cmpi eq, %arg0, %c1_i32 : i32
    %6 = arith.extui %5 : i1 to i32
    %c0_i32_2 = arith.constant 0 : i32
    %7 = arith.cmpi ne, %6, %c0_i32_2 : i32
    scf.if %7 {
      %11 = arith.truncf %1 : vector<8x32xf32> to vector<8x32xbf16>
      %c0_4 = arith.constant 0 : index
      %c0_5 = arith.constant 0 : index
      %12 = vector.load %arg3[%c0_4, %c0_5] : memref<32x24xbf16, #tpu.memory_space<vmem>>, vector<32x24xbf16>
      %cst_6 = arith.constant dense<0.000000e+00> : vector<8x24xf32>
      %13 = tpu.matmul %11, %12, %cst_6 {dimension_numbers = #tpu.dot_dimension_numbers<[1], [0], [0], [1], [0, 0, 1, 1], [], []>} : vector<8x32xbf16>, vector<32x24xbf16>, vector<8x24xf32> -> vector<8x24xf32>
      %c0_7 = arith.constant 0 : index
      %c0_8 = arith.constant 0 : index
      %14 = vector.load %arg10[%c0_7, %c0_8] : memref<2x24xf32, #tpu.memory_space<vmem>>, vector<1x24xf32>
      %15 = vector.broadcast %14 : vector<1x24xf32> to vector<8x24xf32>
      %16 = arith.mulf %13, %15 : vector<8x24xf32>
      %c1 = arith.constant 1 : index
      %c0_9 = arith.constant 0 : index
      %17 = vector.load %arg10[%c1, %c0_9] : memref<2x24xf32, #tpu.memory_space<vmem>>, vector<1x24xf32>
      %18 = vector.broadcast %17 : vector<1x24xf32> to vector<8x24xf32>
      %19 = arith.addf %16, %18 : vector<8x24xf32>
      %cst_10 = arith.constant 0.000000e+00 : f32
      %20 = vector.broadcast %cst_10 : f32 to vector<8x24xf32>
      %21 = arith.maximumf %19, %20 : vector<8x24xf32>
      %22 = arith.truncf %21 : vector<8x24xf32> to vector<8x24xbf16>
      %c0_11 = arith.constant 0 : index
      %c0_12 = arith.constant 0 : index
      %23 = vector.load %arg5[%c0_11, %c0_12] : memref<24x16xbf16, #tpu.memory_space<vmem>>, vector<24x16xbf16>
      %cst_13 = arith.constant dense<0.000000e+00> : vector<8x16xf32>
      %24 = tpu.matmul %22, %23, %cst_13 {dimension_numbers = #tpu.dot_dimension_numbers<[1], [0], [0], [1], [0, 0, 1, 1], [], []>} : vector<8x24xbf16>, vector<24x16xbf16>, vector<8x16xf32> -> vector<8x16xf32>
      %cst_14 = arith.constant dense<0.000000e+00> : vector<1x16xf32>
      %25 = tpu.matmul %0, %24, %cst_14 {dimension_numbers = #tpu.dot_dimension_numbers<[1], [0], [0], [1], [0, 0, 1, 1], [], []>} : vector<1x8xf32>, vector<8x16xf32>, vector<1x16xf32> -> vector<1x16xf32>
      %26 = arith.mulf %24, %24 : vector<8x16xf32>
      %cst_15 = arith.constant dense<0.000000e+00> : vector<1x16xf32>
      %27 = tpu.matmul %0, %26, %cst_15 {dimension_numbers = #tpu.dot_dimension_numbers<[1], [0], [0], [1], [0, 0, 1, 1], [], []>} : vector<1x8xf32>, vector<8x16xf32>, vector<1x16xf32> -> vector<1x16xf32>
      %c0_i32_16 = arith.constant 0 : i32
      %28 = arith.cmpi eq, %arg1, %c0_i32_16 : i32
      %29 = arith.extui %28 : i1 to i32
      %c0_i32_17 = arith.constant 0 : i32
      %30 = arith.cmpi ne, %29, %c0_i32_17 : i32
      scf.if %30 {
        %cst_28 = arith.constant 0.000000e+00 : f32
        %40 = vector.broadcast %cst_28 : f32 to vector<2x16xf32>
        %c0_29 = arith.constant 0 : index
        %c0_30 = arith.constant 0 : index
        %41 = vector.load %arg11[%c0_29, %c0_30] : memref<2x16xf32, #tpu.memory_space<vmem>>, vector<2x16xf32>
        tpu.vector_store %arg11[%c0_29, %c0_30], %40 {strides = array<i32>} : memref<2x16xf32, #tpu.memory_space<vmem>>, vector<2x16xf32>,
      } else {
      }
      %c0_18 = arith.constant 0 : index
      %c0_19 = arith.constant 0 : index
      %31 = vector.load %arg11[%c0_18, %c0_19] : memref<2x16xf32, #tpu.memory_space<vmem>>, vector<1x16xf32>
      %32 = arith.addf %31, %25 : vector<1x16xf32>
      %c0_20 = arith.constant 0 : index
      %c0_21 = arith.constant 0 : index
      %33 = vector.load %arg11[%c0_20, %c0_21] : memref<2x16xf32, #tpu.memory_space<vmem>>, vector<1x16xf32>
      tpu.vector_store %arg11[%c0_20, %c0_21], %32 {strides = array<i32>} : memref<2x16xf32, #tpu.memory_space<vmem>>, vector<1x16xf32>,
      %c1_22 = arith.constant 1 : index
      %c0_23 = arith.constant 0 : index
      %34 = vector.load %arg11[%c1_22, %c0_23] : memref<2x16xf32, #tpu.memory_space<vmem>>, vector<1x16xf32>
      %35 = arith.addf %34, %27 : vector<1x16xf32>
      %c1_24 = arith.constant 1 : index
      %c0_25 = arith.constant 0 : index
      %36 = vector.load %arg11[%c1_24, %c0_25] : memref<2x16xf32, #tpu.memory_space<vmem>>, vector<1x16xf32>
      tpu.vector_store %arg11[%c1_24, %c0_25], %35 {strides = array<i32>} : memref<2x16xf32, #tpu.memory_space<vmem>>, vector<1x16xf32>,
      %c0_i32_26 = arith.constant 0 : i32
      %37 = arith.cmpi eq, %arg1, %c0_i32_26 : i32
      %38 = arith.extui %37 : i1 to i32
      %c0_i32_27 = arith.constant 0 : i32
      %39 = arith.cmpi ne, %38, %c0_i32_27 : i32
      scf.if %39 {
        %c0_28 = arith.constant 0 : index
        %c0_29 = arith.constant 0 : index
        %40 = vector.load %arg11[%c0_28, %c0_29] : memref<2x16xf32, #tpu.memory_space<vmem>>, vector<1x16xf32>
        %cst_30 = arith.constant 1.250000e-01 : f32
        %41 = vector.broadcast %cst_30 : f32 to vector<1x16xf32>
        %42 = arith.mulf %40, %41 : vector<1x16xf32>
        %c1_31 = arith.constant 1 : index
        %c0_32 = arith.constant 0 : index
        %43 = vector.load %arg11[%c1_31, %c0_32] : memref<2x16xf32, #tpu.memory_space<vmem>>, vector<1x16xf32>
        %cst_33 = arith.constant 1.250000e-01 : f32
        %44 = vector.broadcast %cst_33 : f32 to vector<1x16xf32>
        %45 = arith.mulf %43, %44 : vector<1x16xf32>
        %46 = arith.mulf %42, %42 : vector<1x16xf32>
        %47 = arith.subf %45, %46 : vector<1x16xf32>
        %cst_34 = arith.constant 0.000000e+00 : f32
        %48 = vector.broadcast %cst_34 : f32 to vector<1x16xf32>
        %49 = arith.maximumf %47, %48 : vector<1x16xf32>
        %c0_35 = arith.constant 0 : index
        %c0_36 = arith.constant 0 : index
        %50 = vector.load %arg6[%c0_35, %c0_36] : memref<2x16xf32, #tpu.memory_space<vmem>>, vector<1x16xf32>
        %cst_37 = arith.constant 9.99999974E-6 : f32
        %51 = vector.broadcast %cst_37 : f32 to vector<1x16xf32>
        %52 = arith.addf %49, %51 : vector<1x16xf32>
        %53 = math.rsqrt %52 : vector<1x16xf32>
        %54 = arith.mulf %50, %53 : vector<1x16xf32>
        %c1_38 = arith.constant 1 : index
        %c0_39 = arith.constant 0 : index
        %55 = vector.load %arg6[%c1_38, %c0_39] : memref<2x16xf32, #tpu.memory_space<vmem>>, vector<1x16xf32>
        %56 = arith.mulf %42, %54 : vector<1x16xf32>
        %57 = arith.subf %55, %56 : vector<1x16xf32>
        %c0_40 = arith.constant 0 : index
        %c0_41 = arith.constant 0 : index
        %58 = vector.load %arg11[%c0_40, %c0_41] : memref<2x16xf32, #tpu.memory_space<vmem>>, vector<1x16xf32>
        tpu.vector_store %arg11[%c0_40, %c0_41], %54 {strides = array<i32>} : memref<2x16xf32, #tpu.memory_space<vmem>>, vector<1x16xf32>,
        %c1_42 = arith.constant 1 : index
        %c0_43 = arith.constant 0 : index
        %59 = vector.load %arg11[%c1_42, %c0_43] : memref<2x16xf32, #tpu.memory_space<vmem>>, vector<1x16xf32>
        tpu.vector_store %arg11[%c1_42, %c0_43], %57 {strides = array<i32>} : memref<2x16xf32, #tpu.memory_space<vmem>>, vector<1x16xf32>,
      } else {
      }
    } else {
    }
    %c2_i32 = arith.constant 2 : i32
    %8 = arith.cmpi eq, %arg0, %c2_i32 : i32
    %9 = arith.extui %8 : i1 to i32
    %c0_i32_3 = arith.constant 0 : i32
    %10 = arith.cmpi ne, %9, %c0_i32_3 : i32
    scf.if %10 {
      %11 = arith.truncf %1 : vector<8x32xf32> to vector<8x32xbf16>
      %c0_4 = arith.constant 0 : index
      %c0_5 = arith.constant 0 : index
      %12 = vector.load %arg3[%c0_4, %c0_5] : memref<32x24xbf16, #tpu.memory_space<vmem>>, vector<32x24xbf16>
      %cst_6 = arith.constant dense<0.000000e+00> : vector<8x24xf32>
      %13 = tpu.matmul %11, %12, %cst_6 {dimension_numbers = #tpu.dot_dimension_numbers<[1], [0], [0], [1], [0, 0, 1, 1], [], []>} : vector<8x32xbf16>, vector<32x24xbf16>, vector<8x24xf32> -> vector<8x24xf32>
      %c0_7 = arith.constant 0 : index
      %c0_8 = arith.constant 0 : index
      %14 = vector.load %arg10[%c0_7, %c0_8] : memref<2x24xf32, #tpu.memory_space<vmem>>, vector<1x24xf32>
      %15 = vector.broadcast %14 : vector<1x24xf32> to vector<8x24xf32>
      %16 = arith.mulf %13, %15 : vector<8x24xf32>
      %c1 = arith.constant 1 : index
      %c0_9 = arith.constant 0 : index
      %17 = vector.load %arg10[%c1, %c0_9] : memref<2x24xf32, #tpu.memory_space<vmem>>, vector<1x24xf32>
      %18 = vector.broadcast %17 : vector<1x24xf32> to vector<8x24xf32>
      %19 = arith.addf %16, %18 : vector<8x24xf32>
      %cst_10 = arith.constant 0.000000e+00 : f32
      %20 = vector.broadcast %cst_10 : f32 to vector<8x24xf32>
      %21 = arith.maximumf %19, %20 : vector<8x24xf32>
      %22 = arith.truncf %21 : vector<8x24xf32> to vector<8x24xbf16>
      %c0_11 = arith.constant 0 : index
      %c0_12 = arith.constant 0 : index
      %23 = vector.load %arg5[%c0_11, %c0_12] : memref<24x16xbf16, #tpu.memory_space<vmem>>, vector<24x16xbf16>
      %cst_13 = arith.constant dense<0.000000e+00> : vector<8x16xf32>
      %24 = tpu.matmul %22, %23, %cst_13 {dimension_numbers = #tpu.dot_dimension_numbers<[1], [0], [0], [1], [0, 0, 1, 1], [], []>} : vector<8x24xbf16>, vector<24x16xbf16>, vector<8x16xf32> -> vector<8x16xf32>
      %c0_14 = arith.constant 0 : index
      %c0_15 = arith.constant 0 : index
      %25 = vector.load %arg11[%c0_14, %c0_15] : memref<2x16xf32, #tpu.memory_space<vmem>>, vector<1x16xf32>
      %26 = vector.broadcast %25 : vector<1x16xf32> to vector<8x16xf32>
      %27 = arith.mulf %24, %26 : vector<8x16xf32>
      %c1_16 = arith.constant 1 : index
      %c0_17 = arith.constant 0 : index
      %28 = vector.load %arg11[%c1_16, %c0_17] : memref<2x16xf32, #tpu.memory_space<vmem>>, vector<1x16xf32>
      %29 = vector.broadcast %28 : vector<1x16xf32> to vector<8x16xf32>
      %30 = arith.addf %27, %29 : vector<8x16xf32>
      %cst_18 = arith.constant 0.000000e+00 : f32
      %31 = vector.broadcast %cst_18 : f32 to vector<8x16xf32>
      %32 = arith.maximumf %30, %31 : vector<8x16xf32>
      %33 = arith.truncf %32 : vector<8x16xf32> to vector<8x16xbf16>
      %c0_19 = arith.constant 0 : index
      %c0_20 = arith.constant 0 : index
      %34 = vector.load %arg7[%c0_19, %c0_20] : memref<16x16xbf16, #tpu.memory_space<vmem>>, vector<16x16xbf16>
      %cst_21 = arith.constant dense<0.000000e+00> : vector<8x16xf32>
      %35 = tpu.matmul %33, %34, %cst_21 {dimension_numbers = #tpu.dot_dimension_numbers<[1], [0], [0], [1], [0, 0, 1, 1], [], []>} : vector<8x16xbf16>, vector<16x16xbf16>, vector<8x16xf32> -> vector<8x16xf32>
      %c0_22 = arith.constant 0 : index
      %c0_23 = arith.constant 0 : index
      %36 = vector.load %arg8[%c0_22, %c0_23] : memref<1x16xf32, #tpu.memory_space<vmem>>, vector<1x16xf32>
      %37 = vector.broadcast %36 : vector<1x16xf32> to vector<8x16xf32>
      %38 = arith.addf %35, %37 : vector<8x16xf32>
      %39 = arith.negf %38 : vector<8x16xf32>
      %40 = math.exp %39 : vector<8x16xf32>
      %cst_24 = arith.constant 1.000000e+00 : f32
      %41 = vector.broadcast %cst_24 : f32 to vector<8x16xf32>
      %42 = arith.addf %41, %40 : vector<8x16xf32>
      %43 = arith.divf %41, %42 : vector<8x16xf32>
      %c0_25 = arith.constant 0 : index
      %c0_26 = arith.constant 0 : index
      %44 = vector.load %arg9[%c0_25, %c0_26] : memref<8x16xf32, #tpu.memory_space<vmem>>, vector<8x16xf32>
      tpu.vector_store %arg9[%c0_25, %c0_26], %43 {strides = array<i32>} : memref<8x16xf32, #tpu.memory_space<vmem>>, vector<8x16xf32>,
    } else {
    }
    return
  }
  func.func @transform_0(%arg0: i32, %arg1: i32) -> (i32, i32) {
    %c0_i32 = arith.constant 0 : i32
    %c0_i32_0 = arith.constant 0 : i32
    return %arg1, %c0_i32 : i32, i32
  }
  func.func @transform_1(%arg0: i32, %arg1: i32) -> (i32, i32) {
    %c0_i32 = arith.constant 0 : i32
    %c0_i32_0 = arith.constant 0 : i32
    %c0_i32_1 = arith.constant 0 : i32
    return %c0_i32, %c0_i32_0 : i32, i32
  }
  func.func @transform_2(%arg0: i32, %arg1: i32) -> (i32, i32) {
    %c0_i32 = arith.constant 0 : i32
    %c0_i32_0 = arith.constant 0 : i32
    %c0_i32_1 = arith.constant 0 : i32
    return %c0_i32, %c0_i32_0 : i32, i32
  }
  func.func @transform_3(%arg0: i32, %arg1: i32) -> (i32, i32) {
    %c0_i32 = arith.constant 0 : i32
    %c0_i32_0 = arith.constant 0 : i32
    %c0_i32_1 = arith.constant 0 : i32
    return %c0_i32, %c0_i32_0 : i32, i32
  }
  func.func @transform_4(%arg0: i32, %arg1: i32) -> (i32, i32) {
    %c0_i32 = arith.constant 0 : i32
    %c0_i32_0 = arith.constant 0 : i32
    %c0_i32_1 = arith.constant 0 : i32
    return %c0_i32, %c0_i32_0 : i32, i32
  }
  func.func @transform_5(%arg0: i32, %arg1: i32) -> (i32, i32) {
    %c0_i32 = arith.constant 0 : i32
    %c0_i32_0 = arith.constant 0 : i32
    %c0_i32_1 = arith.constant 0 : i32
    return %c0_i32, %c0_i32_0 : i32, i32
  }
  func.func @transform_6(%arg0: i32, %arg1: i32) -> (i32, i32) {
    %c0_i32 = arith.constant 0 : i32
    %c0_i32_0 = arith.constant 0 : i32
    %c0_i32_1 = arith.constant 0 : i32
    return %c0_i32, %c0_i32_0 : i32, i32
  }
  func.func @transform_7(%arg0: i32, %arg1: i32) -> (i32, i32) {
    %c2_i32 = arith.constant 2 : i32
    %0 = arith.cmpi eq, %arg0, %c2_i32 : i32
    %c0_i32 = arith.constant 0 : i32
    %1 = arith.select %0, %arg1, %c0_i32 : i32
    %c0_i32_0 = arith.constant 0 : i32
    %c0_i32_1 = arith.constant 0 : i32
    return %1, %c0_i32_0 : i32, i32
  }
}

</mosaic_0001>

<llo_original>
// kernel: tpu_custom_call.1
$region0: #{tpu_custom_call.1}
  #allocation0 [shape = 'u32[]', space=smem, size = 0x4, offset = 0x4, fixed_abs, tag = 'smem constant byte address 0x4 - core index']
  #allocation1 [shape = 'u32[144,128]{1,0:T(1,128)}', space=vmem, size = 0x12000, scoped, tag = 'internal scratch']
  #allocation2 [shape = 'f32[2,24]{1,0:T(2,128)}', space=vmem, size = 0x400, scoped, tag = 'scratch operand']
  #allocation3 [shape = 'f32[2,16]{1,0:T(2,128)}', space=vmem, size = 0x400, scoped, tag = 'scratch operand']
  %s0 = inlined_call_operand.vmem [shape: f32[8,32], index: 0, kind: input, shape index: {}]
  %s1 = inlined_call_operand.vmem [shape: bf16[32,24], index: 1, kind: input, shape index: {}]
  %s2 = inlined_call_operand.vmem [shape: f32[2,24], index: 2, kind: input, shape index: {}]
  %s3 = inlined_call_operand.vmem [shape: bf16[24,16], index: 3, kind: input, shape index: {}]
  %s4 = inlined_call_operand.vmem [shape: f32[2,16], index: 4, kind: input, shape index: {}]
  %s5 = inlined_call_operand.vmem [shape: bf16[16,16], index: 5, kind: input, shape index: {}]
  %s6 = inlined_call_operand.vmem [shape: f32[1,16], index: 6, kind: input, shape index: {}]
  %s7 = inlined_call_operand.hbm [shape: f32[8,16], index: 7, kind: output, shape index: {}]
  %s8 = sld [smem:[#allocation0]]
  $region89: #{tpu_custom_call.1} parent=0
    _
  %s10 = ssub.s32 1, %s8
  %s11 = scalar_select 0, %s10, %s8
  $region1: #{tpu_custom_call.1} parent=0
    #allocation4 [shape = 'u8[8192]{0}', space=vmem, size = 0x2000, scoped, tag = 'output window, operand 0']
    #allocation5 [shape = 's32[2]{0}', space=sflag, size = 0x8, scoped, tag = 'scoped memory for tpu_custom_call.1']
    %12 = vsyncpa [#allocation5], 0
    %s13 = scalar_lea.sflag [#allocation5], 1
    %14 = vsyncpa %s13, 0
    loop: start=0, step=1, limit=5
    $region2: #{tpu_custom_call.1} parent=1 // loop_pre_header
      _
    $region3: #{tpu_custom_call.1} parent=1 // loop_header
      %s16 = sphi 0, %s20
      %p17 = scmp.ge.s32.totalorder %s16, 5
      %s23 = sphi 0, %s35
      %s24 = sphi 0, %s31
      %s25 = sphi 0, %s23
      %s26 = sphi 0, %s24
      %s27 = sphi 0, %s25
      %s28 = sphi 0, %s26
      %s38 = sphi 0, %s40
      %s41 = sphi 0, %s38
      %s42 = sphi 0, %s41
      %s58 = sphi 0, %s42
      %s62 = sphi 0, %s62
      %s64 = sphi 0, %s62
      %s65 = sphi 0, %s64
      %s79 = sphi 0, %s65
      %s83 = sphi 0, %s83
      %s85 = sphi 0, %s83
      %s86 = sphi 0, %s85
      %s100 = sphi 0, %s86
      %s104 = sphi 0, %s104
      %s106 = sphi 0, %s104
      %s107 = sphi 0, %s106
      %s121 = sphi 0, %s107
      %s125 = sphi 0, %s125
      %s127 = sphi 0, %s125
      %s128 = sphi 0, %s127
      %s142 = sphi 0, %s128
      %s146 = sphi 0, %s146
      %s148 = sphi 0, %s146
      %s149 = sphi 0, %s148
      %s163 = sphi 0, %s149
      %s167 = sphi 0, %s167
      %s169 = sphi 0, %s167
      %s170 = sphi 0, %s169
      %s184 = sphi 0, %s170
      %s194 = sphi 0, %s196
      %s197 = sphi 0, %s194
      %s198 = sphi 0, %s197
      %s214 = sphi 0, %s198
    $region4: #{tpu_custom_call.1} parent=1 // loop_header_branch
      %19 = sbr.rel (%p17) target = $region8
    $region5: #{tpu_custom_call.1} parent=1 // loop_body
      %s21 = ssub.s32 %s16, 1
      %s22 = ssub.s32 %s16, 2
      %s29 = sadd.s32 1, %s24
      %p30 = scmp.ge.s32.totalorder %s29, 1
      %s31 = scalar_select %p30, 0, %s29
      %s32 = sadd.s32 1, %s23
      %s33 = scalar_select %p30, %s32, %s23
      %p34 = scmp.ge.s32.totalorder %s33, 3
      %s35 = scalar_select %p34, 0, %s33
      %s36 = ssub.s32 %s24, %s31
      %p37 = scmp.eq.s32.totalorder %s36, 0
      %s39 = sadd.s32 %s38, 1
      %s40 = scalar_select %p37, %s38, %s39
      %p43 = pneg %p37
      %p44 = scmp.eq.s32.totalorder %s16, 2
      %p45 = por %p43, %p44
      %p46 = scmp.ne.s32.totalorder %s38, %s41
      %p47 = scmp.eq.s32.totalorder %s16, 0
      %p48 = por %p46, %p47
      %p49 = scmp.ne.s32.totalorder %s38, %s41
      %p50 = scmp.eq.s32.totalorder %s21, 2
      %p51 = por %p49, %p50
      %p52 = scmp.ne.s32.totalorder %s41, %s42
      %p53 = scmp.eq.s32.totalorder %s21, 0
      %p54 = por %p52, %p53
      %p55 = scmp.ne.s32.totalorder %s41, %s42
      %p56 = scmp.eq.s32.totalorder %s22, 2
      %p57 = por %p55, %p56
      %p59 = scmp.ne.s32.totalorder %s42, %s58
      %p60 = scmp.eq.s32.totalorder %s22, 0
      %p61 = por %p59, %p60
      %s63 = sadd.s32 %s62, 1
      %p66 = scmp.eq.s32.totalorder %s16, 2
      %p67 = scmp.ne.s32.totalorder %s62, %s64
      %p68 = scmp.eq.s32.totalorder %s16, 0
      %p69 = por %p67, %p68
      %p70 = scmp.ne.s32.totalorder %s62, %s64
      %p71 = scmp.eq.s32.totalorder %s21, 2
      %p72 = por %p70, %p71
      %p73 = scmp.ne.s32.totalorder %s64, %s65
      %p74 = scmp.eq.s32.totalorder %s21, 0
      %p75 = por %p73, %p74
      %p76 = scmp.ne.s32.totalorder %s64, %s65
      %p77 = scmp.eq.s32.totalorder %s22, 2
      %p78 = por %p76, %p77
      %p80 = scmp.ne.s32.totalorder %s65, %s79
      %p81 = scmp.eq.s32.totalorder %s22, 0
      %p82 = por %p80, %p81
      %s84 = sadd.s32 %s83, 1
      %p87 = scmp.eq.s32.totalorder %s16, 2
      %p88 = scmp.ne.s32.totalorder %s83, %s85
      %p89 = scmp.eq.s32.totalorder %s16, 0
      %p90 = por %p88, %p89
      %p91 = scmp.ne.s32.totalorder %s83, %s85
      %p92 = scmp.eq.s32.totalorder %s21, 2
      %p93 = por %p91, %p92
      %p94 = scmp.ne.s32.totalorder %s85, %s86
      %p95 = scmp.eq.s32.totalorder %s21, 0
      %p96 = por %p94, %p95
      %p97 = scmp.ne.s32.totalorder %s85, %s86
      %p98 = scmp.eq.s32.totalorder %s22, 2
      %p99 = por %p97, %p98
      %p101 = scmp.ne.s32.totalorder %s86, %s100
      %p102 = scmp.eq.s32.totalorder %s22, 0
      %p103 = por %p101, %p102
      %s105 = sadd.s32 %s104, 1
      %p108 = scmp.eq.s32.totalorder %s16, 2
      %p109 = scmp.ne.s32.totalorder %s104, %s106
      %p110 = scmp.eq.s32.totalorder %s16, 0
      %p111 = por %p109, %p110
      %p112 = scmp.ne.s32.totalorder %s104, %s106
      %p113 = scmp.eq.s32.totalorder %s21, 2
      %p114 = por %p112, %p113
      %p115 = scmp.ne.s32.totalorder %s106, %s107
      %p116 = scmp.eq.s32.totalorder %s21, 0
      %p117 = por %p115, %p116
      %p118 = scmp.ne.s32.totalorder %s106, %s107
      %p119 = scmp.eq.s32.totalorder %s22, 2
      %p120 = por %p118, %p119
      %p122 = scmp.ne.s32.totalorder %s107, %s121
      %p123 = scmp.eq.s32.totalorder %s22, 0
      %p124 = por %p122, %p123
      %s126 = sadd.s32 %s125, 1
      %p129 = scmp.eq.s32.totalorder %s16, 2
      %p130 = scmp.ne.s32.totalorder %s125, %s127
      %p131 = scmp.eq.s32.totalorder %s16, 0
      %p132 = por %p130, %p131
      %p133 = scmp.ne.s32.totalorder %s125, %s127
      %p134 = scmp.eq.s32.totalorder %s21, 2
      %p135 = por %p133, %p134
      %p136 = scmp.ne.s32.totalorder %s127, %s128
      %p137 = scmp.eq.s32.totalorder %s21, 0
      %p138 = por %p136, %p137
      %p139 = scmp.ne.s32.totalorder %s127, %s128
      %p140 = scmp.eq.s32.totalorder %s22, 2
      %p141 = por %p139, %p140
      %p143 = scmp.ne.s32.totalorder %s128, %s142
      %p144 = scmp.eq.s32.totalorder %s22, 0
      %p145 = por %p143, %p144
      %s147 = sadd.s32 %s146, 1
      %p150 = scmp.eq.s32.totalorder %s16, 2
      %p151 = scmp.ne.s32.totalorder %s146, %s148
      %p152 = scmp.eq.s32.totalorder %s16, 0
      %p153 = por %p151, %p152
      %p154 = scmp.ne.s32.totalorder %s146, %s148
      %p155 = scmp.eq.s32.totalorder %s21, 2
      %p156 = por %p154, %p155
      %p157 = scmp.ne.s32.totalorder %s148, %s149
      %p158 = scmp.eq.s32.totalorder %s21, 0
      %p159 = por %p157, %p158
      %p160 = scmp.ne.s32.totalorder %s148, %s149
      %p161 = scmp.eq.s32.totalorder %s22, 2
      %p162 = por %p160, %p161
      %p164 = scmp.ne.s32.totalorder %s149, %s163
      %p165 = scmp.eq.s32.totalorder %s22, 0
      %p166 = por %p164, %p165
      %s168 = sadd.s32 %s167, 1
      %p171 = scmp.eq.s32.totalorder %s16, 2
      %p172 = scmp.ne.s32.totalorder %s167, %s169
      %p173 = scmp.eq.s32.totalorder %s16, 0
      %p174 = por %p172, %p173
      %p175 = scmp.ne.s32.totalorder %s167, %s169
      %p176 = scmp.eq.s32.totalorder %s21, 2
      %p177 = por %p175, %p176
      %p178 = scmp.ne.s32.totalorder %s169, %s170
      %p179 = scmp.eq.s32.totalorder %s21, 0
      %p180 = por %p178, %p179
      %p181 = scmp.ne.s32.totalorder %s169, %s170
      %p182 = scmp.eq.s32.totalorder %s22, 2
      %p183 = por %p181, %p182
      %p185 = scmp.ne.s32.totalorder %s170, %s184
      %p186 = scmp.eq.s32.totalorder %s22, 0
      %p187 = por %p185, %p186
      %p188 = scmp.eq.s32.totalorder %s23, 2
      %s189 = scalar_select %p188, %s24, 0
      %p190 = scmp.eq.s32.totalorder %s35, 2
      %s191 = scalar_select %p190, %s31, 0
      %s192 = ssub.s32 %s189, %s191
      %p193 = scmp.eq.s32.totalorder %s192, 0
      %s195 = sadd.s32 %s194, 1
      %s196 = scalar_select %p193, %s194, %s195
      %p199 = pneg %p193
      %p200 = scmp.eq.s32.totalorder %s16, 2
      %p201 = por %p199, %p200
      %p202 = scmp.ne.s32.totalorder %s194, %s197
      %p203 = scmp.eq.s32.totalorder %s16, 0
      %p204 = por %p202, %p203
      %p205 = scmp.ne.s32.totalorder %s194, %s197
      %p206 = scmp.eq.s32.totalorder %s21, 2
      %p207 = por %p205, %p206
      %p208 = scmp.ne.s32.totalorder %s197, %s198
      %p209 = scmp.eq.s32.totalorder %s21, 0
      %p210 = por %p208, %p209
      %p211 = scmp.ne.s32.totalorder %s197, %s198
      %p212 = scmp.eq.s32.totalorder %s22, 2
      %p213 = por %p211, %p212
      %p215 = scmp.ne.s32.totalorder %s198, %s214
      %p216 = scmp.eq.s32.totalorder %s22, 0
      %p217 = por %p215, %p216
      %p218 = scmp.le.s32.totalorder 1, %s16
      %p219 = scmp.lt.s32.totalorder %s16, 4
      %p220 = pnand %p218, %p219
      %p221 = pneg %p220
      // Predicated region
      $region9: #{tpu_custom_call.1} parent=5 // pred_check
        _
      $region10: #{tpu_custom_call.1} parent=5 // pred_check_branch
        %223 = sbr.rel (%p220) target = $region12
      $region11: #{tpu_custom_call.1} parent=5 // pred_region
        %s224 = ssub.s32 %s16, 1
        // Predicated region
        $region13: #{tpu_custom_call.1} parent=11 // pred_check
          %p225 = pneg %p54
        $region14: #{tpu_custom_call.1} parent=11 // pred_check_branch
          %227 = sbr.rel (%p225) target = $region16
        $region15: #{tpu_custom_call.1} parent=11 // pred_region
          %p228 = scmp.lt.s32.totalorder %s26, 0
          %s229 = scalar_select %p228, %s26, 0
          %s230 = smul.addr %s229, 8
          %s231 = scalar_lea.vmem %s0, %s230
        $region16: #{tpu_custom_call.1} parent=11 // pred_fallthru
          _
        // Predicated region
        $region17: #{tpu_custom_call.1} parent=11 // pred_check
          %p232 = pneg %p75
        $region18: #{tpu_custom_call.1} parent=11 // pred_check_branch
          %234 = sbr.rel (%p232) target = $region20
        $region19: #{tpu_custom_call.1} parent=11 // pred_region
          _
        $region20: #{tpu_custom_call.1} parent=11 // pred_fallthru
          _
        // Predicated region
        $region21: #{tpu_custom_call.1} parent=11 // pred_check
          %p235 = pneg %p96
        $region22: #{tpu_custom_call.1} parent=11 // pred_check_branch
          %237 = sbr.rel (%p235) target = $region24
        $region23: #{tpu_custom_call.1} parent=11 // pred_region
          _
        $region24: #{tpu_custom_call.1} parent=11 // pred_fallthru
          _
        // Predicated region
        $region25: #{tpu_custom_call.1} parent=11 // pred_check
          %p238 = pneg %p117
        $region26: #{tpu_custom_call.1} parent=11 // pred_check_branch
          %240 = sbr.rel (%p238) target = $region28
        $region27: #{tpu_custom_call.1} parent=11 // pred_region
          _
        $region28: #{tpu_custom_call.1} parent=11 // pred_fallthru
          _
        // Predicated region
        $region29: #{tpu_custom_call.1} parent=11 // pred_check
          %p241 = pneg %p138
        $region30: #{tpu_custom_call.1} parent=11 // pred_check_branch
          %243 = sbr.rel (%p241) target = $region32
        $region31: #{tpu_custom_call.1} parent=11 // pred_region
          _
        $region32: #{tpu_custom_call.1} parent=11 // pred_fallthru
          _
        // Predicated region
        $region33: #{tpu_custom_call.1} parent=11 // pred_check
          %p244 = pneg %p159
        $region34: #{tpu_custom_call.1} parent=11 // pred_check_branch
          %246 = sbr.rel (%p244) target = $region36
        $region35: #{tpu_custom_call.1} parent=11 // pred_region
          _
        $region36: #{tpu_custom_call.1} parent=11 // pred_fallthru
          _
        // Predicated region
        $region37: #{tpu_custom_call.1} parent=11 // pred_check
          %p247 = pneg %p180
        $region38: #{tpu_custom_call.1} parent=11 // pred_check_branch
          %249 = sbr.rel (%p247) target = $region40
        $region39: #{tpu_custom_call.1} parent=11 // pred_region
          _
        $region40: #{tpu_custom_call.1} parent=11 // pred_fallthru
          _
      $region12: #{tpu_custom_call.1} parent=5 // pred_fallthru
        _
      %p250 = scmp.lt.s32.totalorder %s16, 3
      // Predicated region
      $region41: #{tpu_custom_call.1} parent=5 // pred_check
        %p251 = pneg %p250
      $region42: #{tpu_custom_call.1} parent=5 // pred_check_branch
        %253 = sbr.rel (%p251) target = $region44
      $region43: #{tpu_custom_call.1} parent=5 // pred_region
        _
      $region44: #{tpu_custom_call.1} parent=5 // pred_fallthru
        _
      %p254 = scmp.le.s32.totalorder 1, %s16
      %p255 = scmp.lt.s32.totalorder %s16, 4
      %p256 = pnand %p254, %p255
      %p257 = pneg %p256
      // Predicated region
      $region45: #{tpu_custom_call.1} parent=5 // pred_check
        _
      $region46: #{tpu_custom_call.1} parent=5 // pred_check_branch
        %259 = sbr.rel (%p256) target = $region48
      $region47: #{tpu_custom_call.1} parent=5 // pred_region
        %s260 = ssub.s32 %s16, 1
        %p261 = scmp.lt.s32.totalorder %s26, 0
        %s262 = scalar_select %p261, %s26, 0
        %s263 = smul.addr %s262, 8
        %s264 = scalar_lea.vmem %s0, %s263
        %p265 = pneg %p54
        %p266 = pneg %p51
        %p267 = pneg %p75
        %p268 = pneg %p72
        %p269 = pneg %p96
        %p270 = pneg %p93
        %p271 = pneg %p117
        %p272 = pneg %p114
        %p273 = pneg %p138
        %p274 = pneg %p135
        %p275 = pneg %p159
        %p276 = pneg %p156
        %p277 = pneg %p180
        %p278 = pneg %p177
        %p279 = pneg %p210
        %p280 = pneg %p207
        %s281 = sand.u32 %s197, 1
        %s282 = scalar_lea.sflag [#allocation5], %s281
        %s283 = sand.u32 %s197, 1
        %s284 = smul.addr %s283, 8
        %s285 = scalar_lea.vmem [#allocation4], %s284
        %p286 = scmp.lt.s32.totalorder %s26, 0
        %s287 = scalar_select %p286, %s26, 0
        %s288 = smul.addr %s287, 8
        %s289 = scalar_lea.vmem %s0, %s288
        %p290 = scmp.eq.s32.totalorder %s25, 2
        %s291 = scalar_select %p290, %s26, 0
        %v293 = vld [vmem:[%s289] sm:$0xff]
        %p294 = scmp.eq.s32.totalorder %s25, 0
        // Predicated region
        $region49: #{tpu_custom_call.1} parent=47 // pred_check
          %p295 = pneg %p294
        $region50: #{tpu_custom_call.1} parent=47 // pred_check_branch
          %297 = sbr.rel (%p295) target = $region52
        $region51: #{tpu_custom_call.1} parent=47 // pred_region
          %v298 = vpack.c.bf16 %v293, %v293
          %v299 = vld [vmem:[%s1] sm:$0xf]
          %v300 = vld [vmem:[%s1 + $0x4] sm:$0xf]
          %v301 = vld [vmem:[%s1 + $0x8] sm:$0xf]
          %v302 = vld [vmem:[%s1 + $0xc] sm:$0xf]
          %v307 = vunpack.c.l.b16 %v299
          %v308 = vunpack.c.l.b16 %v300
          %v309 = vunpack.c.l.b16 %v301
          %v310 = vunpack.c.l.b16 %v302
          %v311 = vpack.c.b16 %v308, %v307
          %v312 = vpack.c.b16 %v310, %v309
          %vm315 = vcmask 261120
          %v317 = vsel %vm315, %v298, 0
          %319 = vmatprep.subr.bf16.mxu0 0
          %320 = vmatpush1.bf16.msra.mxu0 %v311
          %321 = vmatprep.subr.bf16.mxu0 0
          %322 = vmatpush1.bf16.msra.mxu0 %v312
          %323 = vmatprep.subr.bf16.mxu0 0
          %324 = vmatpush1.bf16.msra.mxu0 0
          %325 = vmatprep.subr.bf16.mxu0 0
          %326 = vmatpush1.bf16.msra.mxu0 0
          %327 = vmatprep.subr.bf16.mxu0 0
          %328 = vmatpush1.bf16.msra.mxu0 0
          %329 = vmatprep.subr.bf16.mxu0 0
          %330 = vmatpush1.bf16.msra.mxu0 0
          %331 = vmatprep.subr.bf16.mxu0 0
          %332 = vmatpush1.bf16.msra.mxu0 0
          %333 = vmatprep.subr.bf16.mxu0 0
          %334 = vmatpush1.bf16.msra.mxu0 0
          %335 = vmatprep.subr.bf16.mxu0 0
          %336 = vmatpush1.bf16.msra.mxu0 0
          %337 = vmatprep.subr.bf16.mxu0 0
          %338 = vmatpush1.bf16.msra.mxu0 0
          %339 = vmatprep.subr.bf16.mxu0 0
          %340 = vmatpush1.bf16.msra.mxu0 0
          %341 = vmatprep.subr.bf16.mxu0 0
          %342 = vmatpush1.bf16.msra.mxu0 0
          %343 = vmatprep.subr.bf16.mxu0 0
          %344 = vmatpush1.bf16.msra.mxu0 0
          %345 = vmatprep.subr.bf16.mxu0 0
          %346 = vmatpush1.bf16.msra.mxu0 0
          %347 = vmatprep.subr.bf16.mxu0 0
          %348 = vmatpush1.bf16.msra.mxu0 0
          %349 = vmatprep.subr.bf16.mxu0 0
          %350 = vmatpush1.bf16.msra.mxu0 0
          %351 = vmatprep.mubr.bf16.mxu0 0
          %352 = vmatmul.mubr.bf16.gmra.mrb[0].mxu0 %v317
          %v353 = vpop.f32.mrb[0].mxu0
          %v354 = vadd.f32 0.0, %v353
          %v355 = vpop.f32.mrb[0].mxu0
          %v356 = vpop.f32.mrb[0].mxu0
          %v357 = vpop.f32.mrb[0].mxu0
          %358 = vdwg.mxu0
          %vm359 = vcmask 64512
          %v361 = vsel %vm359, 1.0, 0
          %363 = vmatprep.subr.mxu0 0.0
          %364 = vmatpush1.msra.mxu0 %v354
          %365 = vmatprep.subr.mxu0 0.0
          %366 = vmatpush1.msra.mxu0 0.0
          %367 = vmatprep.subr.mxu0 0.0
          %368 = vmatpush1.msra.mxu0 0.0
          %369 = vmatprep.subr.mxu0 0.0
          %370 = vmatpush1.msra.mxu0 0.0
          %371 = vmatprep.subr.mxu0 0.0
          %372 = vmatpush1.msra.mxu0 0.0
          %373 = vmatprep.subr.mxu0 0.0
          %374 = vmatpush1.msra.mxu0 0.0
          %375 = vmatprep.subr.mxu0 0.0
          %376 = vmatpush1.msra.mxu0 0.0
          %377 = vmatprep.subr.mxu0 0.0
          %378 = vmatpush1.msra.mxu0 0.0
          %379 = vmatprep.subr.mxu0 0.0
          %380 = vmatpush1.msra.mxu0 0.0
          %381 = vmatprep.subr.mxu0 0.0
          %382 = vmatpush1.msra.mxu0 0.0
          %383 = vmatprep.subr.mxu0 0.0
          %384 = vmatpush1.msra.mxu0 0.0
          %385 = vmatprep.subr.mxu0 0.0
          %386 = vmatpush1.msra.mxu0 0.0
          %387 = vmatprep.subr.mxu0 0.0
          %388 = vmatpush1.msra.mxu0 0.0
          %389 = vmatprep.subr.mxu0 0.0
          %390 = vmatpush1.msra.mxu0 0.0
          %391 = vmatprep.subr.mxu0 0.0
          %392 = vmatpush1.msra.mxu0 0.0
          %393 = vmatprep.subr.mxu0 0.0
          %394 = vmatpush1.msra.mxu0 0.0
          %395 = vmatprep.subr.mxu0 0.0
          %396 = vmatpush1.msra.mxu0 0.0
          %397 = vmatprep.subr.mxu0 0.0
          %398 = vmatpush1.msra.mxu0 0.0
          %399 = vmatprep.subr.mxu0 0.0
          %400 = vmatpush1.msra.mxu0 0.0
          %401 = vmatprep.subr.mxu0 0.0
          %402 = vmatpush1.msra.mxu0 0.0
          %403 = vmatprep.subr.mxu0 0.0
          %404 = vmatpush1.msra.mxu0 0.0
          %405 = vmatprep.subr.mxu0 0.0
          %406 = vmatpush1.msra.mxu0 0.0
          %407 = vmatprep.subr.mxu0 0.0
          %408 = vmatpush1.msra.mxu0 0.0
          %409 = vmatprep.subr.mxu0 0.0
          %410 = vmatpush1.msra.mxu0 0.0
          %411 = vmatprep.subr.mxu0 0.0
          %412 = vmatpush1.msra.mxu0 0.0
          %413 = vmatprep.subr.mxu0 0.0
          %414 = vmatpush1.msra.mxu0 0.0
          %415 = vmatprep.subr.mxu0 0.0
          %416 = vmatpush1.msra.mxu0 0.0
          %417 = vmatprep.subr.mxu0 0.0
          %418 = vmatpush1.msra.mxu0 0.0
          %419 = vmatprep.subr.mxu0 0.0
          %420 = vmatpush1.msra.mxu0 0.0
          %421 = vmatprep.subr.mxu0 0.0
          %422 = vmatpush1.msra.mxu0 0.0
          %423 = vmatprep.subr.mxu0 0.0
          %424 = vmatpush1.msra.mxu0 0.0
          %425 = vmatprep.subr.mxu0 0.0
          %426 = vmatpush1.msra.mxu0 0.0
          %427 = vmatprep.mubr.f32.mxu0 0.0
          %428 = vmatmul.mubr.f32.gmra.mrb[0].mxu0 %v361
          %v429 = vpop.f32.mrb[0].mxu0
          %v430 = vadd.f32 0.0, %v429
          %v431 = vpop.f32.mrb[0].mxu0
          %432 = vdwg.mxu0
          %v433 = vmul.f32 %v354, %v354
          %434 = vmatprep.subr.mxu0 0.0
          %435 = vmatpush1.msra.mxu0 %v433
          %436 = vmatprep.subr.mxu0 0.0
          %437 = vmatpush1.msra.mxu0 0.0
          %438 = vmatprep.subr.mxu0 0.0
          %439 = vmatpush1.msra.mxu0 0.0
          %440 = vmatprep.subr.mxu0 0.0
          %441 = vmatpush1.msra.mxu0 0.0
          %442 = vmatprep.subr.mxu0 0.0
          %443 = vmatpush1.msra.mxu0 0.0
          %444 = vmatprep.subr.mxu0 0.0
          %445 = vmatpush1.msra.mxu0 0.0
          %446 = vmatprep.subr.mxu0 0.0
          %447 = vmatpush1.msra.mxu0 0.0
          %448 = vmatprep.subr.mxu0 0.0
          %449 = vmatpush1.msra.mxu0 0.0
          %450 = vmatprep.subr.mxu0 0.0
          %451 = vmatpush1.msra.mxu0 0.0
          %452 = vmatprep.subr.mxu0 0.0
          %453 = vmatpush1.msra.mxu0 0.0
          %454 = vmatprep.subr.mxu0 0.0
          %455 = vmatpush1.msra.mxu0 0.0
          %456 = vmatprep.subr.mxu0 0.0
          %457 = vmatpush1.msra.mxu0 0.0
          %458 = vmatprep.subr.mxu0 0.0
          %459 = vmatpush1.msra.mxu0 0.0
          %460 = vmatprep.subr.mxu0 0.0
          %461 = vmatpush1.msra.mxu0 0.0
          %462 = vmatprep.subr.mxu0 0.0
          %463 = vmatpush1.msra.mxu0 0.0
          %464 = vmatprep.subr.mxu0 0.0
          %465 = vmatpush1.msra.mxu0 0.0
          %466 = vmatprep.subr.mxu0 0.0
          %467 = vmatpush1.msra.mxu0 0.0
          %468 = vmatprep.subr.mxu0 0.0
          %469 = vmatpush1.msra.mxu0 0.0
          %470 = vmatprep.subr.mxu0 0.0
          %471 = vmatpush1.msra.mxu0 0.0
          %472 = vmatprep.subr.mxu0 0.0
          %473 = vmatpush1.msra.mxu0 0.0
          %474 = vmatprep.subr.mxu0 0.0
          %475 = vmatpush1.msra.mxu0 0.0
          %476 = vmatprep.subr.mxu0 0.0
          %477 = vmatpush1.msra.mxu0 0.0
          %478 = vmatprep.subr.mxu0 0.0
          %479 = vmatpush1.msra.mxu0 0.0
          %480 = vmatprep.subr.mxu0 0.0
          %481 = vmatpush1.msra.mxu0 0.0
          %482 = vmatprep.subr.mxu0 0.0
          %483 = vmatpush1.msra.mxu0 0.0
          %484 = vmatprep.subr.mxu0 0.0
          %485 = vmatpush1.msra.mxu0 0.0
          %486 = vmatprep.subr.mxu0 0.0
          %487 = vmatpush1.msra.mxu0 0.0
          %488 = vmatprep.subr.mxu0 0.0
          %489 = vmatpush1.msra.mxu0 0.0
          %490 = vmatprep.subr.mxu0 0.0
          %491 = vmatpush1.msra.mxu0 0.0
          %492 = vmatprep.subr.mxu0 0.0
          %493 = vmatpush1.msra.mxu0 0.0
          %494 = vmatprep.subr.mxu0 0.0
          %495 = vmatpush1.msra.mxu0 0.0
          %496 = vmatprep.subr.mxu0 0.0
          %497 = vmatpush1.msra.mxu0 0.0
          %498 = vmatprep.mubr.f32.mxu0 0.0
          %499 = vmatmul.mubr.f32.gmra.mrb[0].mxu0 %v361
          %v500 = vpop.f32.mrb[0].mxu0
          %v501 = vadd.f32 0.0, %v500
          %v502 = vpop.f32.mrb[0].mxu0
          %503 = vdwg.mxu0
          %p504 = scmp.eq.s32.totalorder %s26, 0
          // Predicated region
          $region53: #{tpu_custom_call.1} parent=51 // pred_check
            %p505 = pneg %p504
          $region54: #{tpu_custom_call.1} parent=51 // pred_check_branch
            %507 = sbr.rel (%p505) target = $region56
          $region55: #{tpu_custom_call.1} parent=51 // pred_region
            %vm508 = vcmask 189440
            %509 = vst.msk [vmem:[#allocation2] sm:$0x3] %vm508, 0.0
          $region56: #{tpu_custom_call.1} parent=51 // pred_fallthru
            _
          %v510 = vld [vmem:[#allocation2] sm:$0x1]
          %v511 = vadd.f32 %v510, %v430
          %vm512 = vcmask 188416
          %513 = vst.msk [vmem:[#allocation2] sm:$0x1] %vm512, %v511
          %v514 = vld [vmem:[#allocation2 + $0x1] sm:$0x1]
          %v515 = vadd.f32 %v514, %v501
          %516 = vst.msk [vmem:[#allocation2 + $0x1] sm:$0x1] %vm512, %v515
          // Predicated region
          $region57: #{tpu_custom_call.1} parent=51 // pred_check
            %p517 = pneg %p504
          $region58: #{tpu_custom_call.1} parent=51 // pred_check_branch
            %519 = sbr.rel (%p517) target = $region60
          $region59: #{tpu_custom_call.1} parent=51 // pred_region
            %v520 = vld [vmem:[#allocation2] sm:$0x1]
            %v521 = vmul.f32 %v520, 0.125
            %v522 = vld [vmem:[#allocation2 + $0x1] sm:$0x1]
            %v523 = vmul.f32 %v522, 0.125
            %v524 = vmul.f32 %v521, %v521
            %v525 = vsub.f32 %v523, %v524
            %v526 = vmax.f32 %v525, 0.0
            %v527 = vld [vmem:[%s2] sm:$0x1]
            %v528 = vadd.f32 %v526, 1e-05
            %v529 = vrsqrt.pop %v528
            %v530 = vmul.f32 %v527, %v529
            %v531 = vld [vmem:[%s2 + $0x1] sm:$0x1]
            %v532 = vmul.f32 %v521, %v530
            %v533 = vsub.f32 %v531, %v532
            %534 = vst.msk [vmem:[#allocation2] sm:$0x1] %vm512, %v530
            %535 = vst.msk [vmem:[#allocation2 + $0x1] sm:$0x1] %vm512, %v533
          $region60: #{tpu_custom_call.1} parent=51 // pred_fallthru
            _
        $region52: #{tpu_custom_call.1} parent=47 // pred_fallthru
          _
        %p536 = scmp.eq.s32.totalorder %s25, 1
        // Predicated region
        $region61: #{tpu_custom_call.1} parent=47 // pred_check
          %p537 = pneg %p536
        $region62: #{tpu_custom_call.1} parent=47 // pred_check_branch
          %539 = sbr.rel (%p537) target = $region64
        $region63: #{tpu_custom_call.1} parent=47 // pred_region
          %v540 = vpack.c.bf16 %v293, %v293
          %v541 = vld [vmem:[%s1] sm:$0xf]
          %v542 = vld [vmem:[%s1 + $0x4] sm:$0xf]
          %v543 = vld [vmem:[%s1 + $0x8] sm:$0xf]
          %v544 = vld [vmem:[%s1 + $0xc] sm:$0xf]
          %v549 = vunpack.c.l.b16 %v541
          %v550 = vunpack.c.l.b16 %v542
          %v551 = vunpack.c.l.b16 %v543
          %v552 = vunpack.c.l.b16 %v544
          %v553 = vpack.c.b16 %v550, %v549
          %v554 = vpack.c.b16 %v552, %v551
          %vm557 = vcmask 261120
          %v559 = vsel %vm557, %v540, 0
          %561 = vmatprep.subr.bf16.mxu0 0
          %562 = vmatpush1.bf16.msra.mxu0 %v553
          %563 = vmatprep.subr.bf16.mxu0 0
          %564 = vmatpush1.bf16.msra.mxu0 %v554
          %565 = vmatprep.subr.bf16.mxu0 0
          %566 = vmatpush1.bf16.msra.mxu0 0
          %567 = vmatprep.subr.bf16.mxu0 0
          %568 = vmatpush1.bf16.msra.mxu0 0
          %569 = vmatprep.subr.bf16.mxu0 0
          %570 = vmatpush1.bf16.msra.mxu0 0
          %571 = vmatprep.subr.bf16.mxu0 0
          %572 = vmatpush1.bf16.msra.mxu0 0
          %573 = vmatprep.subr.bf16.mxu0 0
          %574 = vmatpush1.bf16.msra.mxu0 0
          %575 = vmatprep.subr.bf16.mxu0 0
          %576 = vmatpush1.bf16.msra.mxu0 0
          %577 = vmatprep.subr.bf16.mxu0 0
          %578 = vmatpush1.bf16.msra.mxu0 0
          %579 = vmatprep.subr.bf16.mxu0 0
          %580 = vmatpush1.bf16.msra.mxu0 0
          %581 = vmatprep.subr.bf16.mxu0 0
          %582 = vmatpush1.bf16.msra.mxu0 0
          %583 = vmatprep.subr.bf16.mxu0 0
          %584 = vmatpush1.bf16.msra.mxu0 0
          %585 = vmatprep.subr.bf16.mxu0 0
          %586 = vmatpush1.bf16.msra.mxu0 0
          %587 = vmatprep.subr.bf16.mxu0 0
          %588 = vmatpush1.bf16.msra.mxu0 0
          %589 = vmatprep.subr.bf16.mxu0 0
          %590 = vmatpush1.bf16.msra.mxu0 0
          %591 = vmatprep.subr.bf16.mxu0 0
          %592 = vmatpush1.bf16.msra.mxu0 0
          %593 = vmatprep.mubr.bf16.mxu0 0
          %594 = vmatmul.mubr.bf16.gmra.mrb[0].mxu0 %v559
          %v595 = vpop.f32.mrb[0].mxu0
          %v596 = vadd.f32 0.0, %v595
          %v597 = vpop.f32.mrb[0].mxu0
          %v598 = vpop.f32.mrb[0].mxu0
          %v599 = vpop.f32.mrb[0].mxu0
          %600 = vdwg.mxu0
          %v601 = vld [vmem:[#allocation2] sm:$0x1]
          %v602 = vlaneseq
          %v603 = vshrl.u32 %v602, 7
          %v604 = vsub.s32 0, %v603
          %v605 = vrot.slane %v601, %v604
          %v606 = vmul.f32 %v596, %v605
          %v607 = vld [vmem:[#allocation2 + $0x1] sm:$0x1]
          %v608 = vlaneseq
          %v609 = vshrl.u32 %v608, 7
          %v610 = vsub.s32 0, %v609
          %v611 = vrot.slane %v607, %v610
          %v612 = vadd.f32 %v606, %v611
          %v613 = vmax.f32 %v612, 0.0
          %v614 = vpack.c.bf16 %v613, %v613
          %v615 = vld [vmem:[%s3] sm:$0xf]
          %v616 = vld [vmem:[%s3 + $0x4] sm:$0xf]
          %v617 = vld [vmem:[%s3 + $0x8] sm:$0xf]
          %v621 = vunpack.c.l.b16 %v615
          %v622 = vunpack.c.l.b16 %v616
          %v623 = vunpack.c.l.b16 %v617
          %v624 = vpack.c.b16 %v622, %v621
          %v625 = vpack.c.b16 %v623, %v623
          %vm627 = vcmask 195584
          %v629 = vsel %vm627, %v614, 0
          %vm631 = vcmask 1043456
          %v633 = vsel %vm631, %v625, 0
          %635 = vmatprep.subr.bf16.mxu0 0
          %636 = vmatpush1.bf16.msra.mxu0 %v624
          %637 = vmatprep.subr.bf16.mxu0 0
          %638 = vmatpush1.bf16.msra.mxu0 %v633
          %639 = vmatprep.subr.bf16.mxu0 0
          %640 = vmatpush1.bf16.msra.mxu0 0
          %641 = vmatprep.subr.bf16.mxu0 0
          %642 = vmatpush1.bf16.msra.mxu0 0
          %643 = vmatprep.subr.bf16.mxu0 0
          %644 = vmatpush1.bf16.msra.mxu0 0
          %645 = vmatprep.subr.bf16.mxu0 0
          %646 = vmatpush1.bf16.msra.mxu0 0
          %647 = vmatprep.subr.bf16.mxu0 0
          %648 = vmatpush1.bf16.msra.mxu0 0
          %649 = vmatprep.subr.bf16.mxu0 0
          %650 = vmatpush1.bf16.msra.mxu0 0
          %651 = vmatprep.subr.bf16.mxu0 0
          %652 = vmatpush1.bf16.msra.mxu0 0
          %653 = vmatprep.subr.bf16.mxu0 0
          %654 = vmatpush1.bf16.msra.mxu0 0
          %655 = vmatprep.subr.bf16.mxu0 0
          %656 = vmatpush1.bf16.msra.mxu0 0
          %657 = vmatprep.subr.bf16.mxu0 0
          %658 = vmatpush1.bf16.msra.mxu0 0
          %659 = vmatprep.subr.bf16.mxu0 0
          %660 = vmatpush1.bf16.msra.mxu0 0
          %661 = vmatprep.subr.bf16.mxu0 0
          %662 = vmatpush1.bf16.msra.mxu0 0
          %663 = vmatprep.subr.bf16.mxu0 0
          %664 = vmatpush1.bf16.msra.mxu0 0
          %665 = vmatprep.subr.bf16.mxu0 0
          %666 = vmatpush1.bf16.msra.mxu0 0
          %667 = vmatprep.mubr.bf16.mxu0 0
          %668 = vmatmul.mubr.bf16.gmra.mrb[0].mxu0 %v629
          %v669 = vpop.f32.mrb[0].mxu0
          %v670 = vadd.f32 0.0, %v669
          %v671 = vpop.f32.mrb[0].mxu0
          %v672 = vpop.f32.mrb[0].mxu0
          %v673 = vpop.f32.mrb[0].mxu0
          %674 = vdwg.mxu0
          %vm675 = vcmask 64512
          %v677 = vsel %vm675, 1.0, 0
          %679 = vmatprep.subr.mxu0 0.0
          %680 = vmatpush1.msra.mxu0 %v670
          %681 = vmatprep.subr.mxu0 0.0
          %682 = vmatpush1.msra.mxu0 0.0
          %683 = vmatprep.subr.mxu0 0.0
          %684 = vmatpush1.msra.mxu0 0.0
          %685 = vmatprep.subr.mxu0 0.0
          %686 = vmatpush1.msra.mxu0 0.0
          %687 = vmatprep.subr.mxu0 0.0
          %688 = vmatpush1.msra.mxu0 0.0
          %689 = vmatprep.subr.mxu0 0.0
          %690 = vmatpush1.msra.mxu0 0.0
          %691 = vmatprep.subr.mxu0 0.0
          %692 = vmatpush1.msra.mxu0 0.0
          %693 = vmatprep.subr.mxu0 0.0
          %694 = vmatpush1.msra.mxu0 0.0
          %695 = vmatprep.subr.mxu0 0.0
          %696 = vmatpush1.msra.mxu0 0.0
          %697 = vmatprep.subr.mxu0 0.0
          %698 = vmatpush1.msra.mxu0 0.0
          %699 = vmatprep.subr.mxu0 0.0
          %700 = vmatpush1.msra.mxu0 0.0
          %701 = vmatprep.subr.mxu0 0.0
          %702 = vmatpush1.msra.mxu0 0.0
          %703 = vmatprep.subr.mxu0 0.0
          %704 = vmatpush1.msra.mxu0 0.0
          %705 = vmatprep.subr.mxu0 0.0
          %706 = vmatpush1.msra.mxu0 0.0
          %707 = vmatprep.subr.mxu0 0.0
          %708 = vmatpush1.msra.mxu0 0.0
          %709 = vmatprep.subr.mxu0 0.0
          %710 = vmatpush1.msra.mxu0 0.0
          %711 = vmatprep.subr.mxu0 0.0
          %712 = vmatpush1.msra.mxu0 0.0
          %713 = vmatprep.subr.mxu0 0.0
          %714 = vmatpush1.msra.mxu0 0.0
          %715 = vmatprep.subr.mxu0 0.0
          %716 = vmatpush1.msra.mxu0 0.0
          %717 = vmatprep.subr.mxu0 0.0
          %718 = vmatpush1.msra.mxu0 0.0
          %719 = vmatprep.subr.mxu0 0.0
          %720 = vmatpush1.msra.mxu0 0.0
          %721 = vmatprep.subr.mxu0 0.0
          %722 = vmatpush1.msra.mxu0 0.0
          %723 = vmatprep.subr.mxu0 0.0
          %724 = vmatpush1.msra.mxu0 0.0
          %725 = vmatprep.subr.mxu0 0.0
          %726 = vmatpush1.msra.mxu0 0.0
          %727 = vmatprep.subr.mxu0 0.0
          %728 = vmatpush1.msra.mxu0 0.0
          %729 = vmatprep.subr.mxu0 0.0
          %730 = vmatpush1.msra.mxu0 0.0
          %731 = vmatprep.subr.mxu0 0.0
          %732 = vmatpush1.msra.mxu0 0.0
          %733 = vmatprep.subr.mxu0 0.0
          %734 = vmatpush1.msra.mxu0 0.0
          %735 = vmatprep.subr.mxu0 0.0
          %736 = vmatpush1.msra.mxu0 0.0
          %737 = vmatprep.subr.mxu0 0.0
          %738 = vmatpush1.msra.mxu0 0.0
          %739 = vmatprep.subr.mxu0 0.0
          %740 = vmatpush1.msra.mxu0 0.0
          %741 = vmatprep.subr.mxu0 0.0
          %742 = vmatpush1.msra.mxu0 0.0
          %743 = vmatprep.mubr.f32.mxu0 0.0
          %744 = vmatmul.mubr.f32.gmra.mrb[0].mxu0 %v677
          %v745 = vpop.f32.mrb[0].mxu0
          %v746 = vadd.f32 0.0, %v745
          %v747 = vpop.f32.mrb[0].mxu0
          %748 = vdwg.mxu0
          %v749 = vmul.f32 %v670, %v670
          %750 = vmatprep.subr.mxu0 0.0
          %751 = vmatpush1.msra.mxu0 %v749
          %752 = vmatprep.subr.mxu0 0.0
          %753 = vmatpush1.msra.mxu0 0.0
          %754 = vmatprep.subr.mxu0 0.0
          %755 = vmatpush1.msra.mxu0 0.0
          %756 = vmatprep.subr.mxu0 0.0
          %757 = vmatpush1.msra.mxu0 0.0
          %758 = vmatprep.subr.mxu0 0.0
          %759 = vmatpush1.msra.mxu0 0.0
          %760 = vmatprep.subr.mxu0 0.0
          %761 = vmatpush1.msra.mxu0 0.0
          %762 = vmatprep.subr.mxu0 0.0
          %763 = vmatpush1.msra.mxu0 0.0
          %764 = vmatprep.subr.mxu0 0.0
          %765 = vmatpush1.msra.mxu0 0.0
          %766 = vmatprep.subr.mxu0 0.0
          %767 = vmatpush1.msra.mxu0 0.0
          %768 = vmatprep.subr.mxu0 0.0
          %769 = vmatpush1.msra.mxu0 0.0
          %770 = vmatprep.subr.mxu0 0.0
          %771 = vmatpush1.msra.mxu0 0.0
          %772 = vmatprep.subr.mxu0 0.0
          %773 = vmatpush1.msra.mxu0 0.0
          %774 = vmatprep.subr.mxu0 0.0
          %775 = vmatpush1.msra.mxu0 0.0
          %776 = vmatprep.subr.mxu0 0.0
          %777 = vmatpush1.msra.mxu0 0.0
          %778 = vmatprep.subr.mxu0 0.0
          %779 = vmatpush1.msra.mxu0 0.0
          %780 = vmatprep.subr.mxu0 0.0
          %781 = vmatpush1.msra.mxu0 0.0
          %782 = vmatprep.subr.mxu0 0.0
          %783 = vmatpush1.msra.mxu0 0.0
          %784 = vmatprep.subr.mxu0 0.0
          %785 = vmatpush1.msra.mxu0 0.0
          %786 = vmatprep.subr.mxu0 0.0
          %787 = vmatpush1.msra.mxu0 0.0
          %788 = vmatprep.subr.mxu0 0.0
          %789 = vmatpush1.msra.mxu0 0.0
          %790 = vmatprep.subr.mxu0 0.0
          %791 = vmatpush1.msra.mxu0 0.0
          %792 = vmatprep.subr.mxu0 0.0
          %793 = vmatpush1.msra.mxu0 0.0
          %794 = vmatprep.subr.mxu0 0.0
          %795 = vmatpush1.msra.mxu0 0.0
          %796 = vmatprep.subr.mxu0 0.0
          %797 = vmatpush1.msra.mxu0 0.0
          %798 = vmatprep.subr.mxu0 0.0
          %799 = vmatpush1.msra.mxu0 0.0
          %800 = vmatprep.subr.mxu0 0.0
          %801 = vmatpush1.msra.mxu0 0.0
          %802 = vmatprep.subr.mxu0 0.0
          %803 = vmatpush1.msra.mxu0 0.0
          %804 = vmatprep.subr.mxu0 0.0
          %805 = vmatpush1.msra.mxu0 0.0
          %806 = vmatprep.subr.mxu0 0.0
          %807 = vmatpush1.msra.mxu0 0.0
          %808 = vmatprep.subr.mxu0 0.0
          %809 = vmatpush1.msra.mxu0 0.0
          %810 = vmatprep.subr.mxu0 0.0
          %811 = vmatpush1.msra.mxu0 0.0
          %812 = vmatprep.subr.mxu0 0.0
          %813 = vmatpush1.msra.mxu0 0.0
          %814 = vmatprep.mubr.f32.mxu0 0.0
          %815 = vmatmul.mubr.f32.gmra.mrb[0].mxu0 %v677
          %v816 = vpop.f32.mrb[0].mxu0
          %v817 = vadd.f32 0.0, %v816
          %v818 = vpop.f32.mrb[0].mxu0
          %819 = vdwg.mxu0
          %p820 = scmp.eq.s32.totalorder %s26, 0
          // Predicated region
          $region65: #{tpu_custom_call.1} parent=63 // pred_check
            %p821 = pneg %p820
          $region66: #{tpu_custom_call.1} parent=63 // pred_check_branch
            %823 = sbr.rel (%p821) target = $region68
          $region67: #{tpu_custom_call.1} parent=63 // pred_region
            %vm824 = vcmask 123904
            %825 = vst.msk [vmem:[#allocation3] sm:$0x3] %vm824, 0.0
          $region68: #{tpu_custom_call.1} parent=63 // pred_fallthru
            _
          %v826 = vld [vmem:[#allocation3] sm:$0x1]
          %v827 = vadd.f32 %v826, %v746
          %vm828 = vcmask 122880
          %829 = vst.msk [vmem:[#allocation3] sm:$0x1] %vm828, %v827
          %v830 = vld [vmem:[#allocation3 + $0x1] sm:$0x1]
          %v831 = vadd.f32 %v830, %v817
          %832 = vst.msk [vmem:[#allocation3 + $0x1] sm:$0x1] %vm828, %v831
          // Predicated region
          $region69: #{tpu_custom_call.1} parent=63 // pred_check
            %p833 = pneg %p820
          $region70: #{tpu_custom_call.1} parent=63 // pred_check_branch
            %835 = sbr.rel (%p833) target = $region72
          $region71: #{tpu_custom_call.1} parent=63 // pred_region
            %v836 = vld [vmem:[#allocation3] sm:$0x1]
            %v837 = vmul.f32 %v836, 0.125
            %v838 = vld [vmem:[#allocation3 + $0x1] sm:$0x1]
            %v839 = vmul.f32 %v838, 0.125
            %v840 = vmul.f32 %v837, %v837
            %v841 = vsub.f32 %v839, %v840
            %v842 = vmax.f32 %v841, 0.0
            %v843 = vld [vmem:[%s4] sm:$0x1]
            %v844 = vadd.f32 %v842, 1e-05
            %v845 = vrsqrt.pop %v844
            %v846 = vmul.f32 %v843, %v845
            %v847 = vld [vmem:[%s4 + $0x1] sm:$0x1]
            %v848 = vmul.f32 %v837, %v846
            %v849 = vsub.f32 %v847, %v848
            %850 = vst.msk [vmem:[#allocation3] sm:$0x1] %vm828, %v846
            %851 = vst.msk [vmem:[#allocation3 + $0x1] sm:$0x1] %vm828, %v849
          $region72: #{tpu_custom_call.1} parent=63 // pred_fallthru
            _
        $region64: #{tpu_custom_call.1} parent=47 // pred_fallthru
          _
        %p852 = scmp.eq.s32.totalorder %s25, 2
        // Predicated region
        $region73: #{tpu_custom_call.1} parent=47 // pred_check
          %p853 = pneg %p852
        $region74: #{tpu_custom_call.1} parent=47 // pred_check_branch
          %855 = sbr.rel (%p853) target = $region76
        $region75: #{tpu_custom_call.1} parent=47 // pred_region
          %v856 = vpack.c.bf16 %v293, %v293
          %v857 = vld [vmem:[%s1] sm:$0xf]
          %v858 = vld [vmem:[%s1 + $0x4] sm:$0xf]
          %v859 = vld [vmem:[%s1 + $0x8] sm:$0xf]
          %v860 = vld [vmem:[%s1 + $0xc] sm:$0xf]
          %v865 = vunpack.c.l.b16 %v857
          %v866 = vunpack.c.l.b16 %v858
          %v867 = vunpack.c.l.b16 %v859
          %v868 = vunpack.c.l.b16 %v860
          %v869 = vpack.c.b16 %v866, %v865
          %v870 = vpack.c.b16 %v868, %v867
          %vm873 = vcmask 261120
          %v875 = vsel %vm873, %v856, 0
          %877 = vmatprep.subr.bf16.mxu0 0
          %878 = vmatpush1.bf16.msra.mxu0 %v869
          %879 = vmatprep.subr.bf16.mxu0 0
          %880 = vmatpush1.bf16.msra.mxu0 %v870
          %881 = vmatprep.subr.bf16.mxu0 0
          %882 = vmatpush1.bf16.msra.mxu0 0
          %883 = vmatprep.subr.bf16.mxu0 0
          %884 = vmatpush1.bf16.msra.mxu0 0
          %885 = vmatprep.subr.bf16.mxu0 0
          %886 = vmatpush1.bf16.msra.mxu0 0
          %887 = vmatprep.subr.bf16.mxu0 0
          %888 = vmatpush1.bf16.msra.mxu0 0
          %889 = vmatprep.subr.bf16.mxu0 0
          %890 = vmatpush1.bf16.msra.mxu0 0
          %891 = vmatprep.subr.bf16.mxu0 0
          %892 = vmatpush1.bf16.msra.mxu0 0
          %893 = vmatprep.subr.bf16.mxu0 0
          %894 = vmatpush1.bf16.msra.mxu0 0
          %895 = vmatprep.subr.bf16.mxu0 0
          %896 = vmatpush1.bf16.msra.mxu0 0
          %897 = vmatprep.subr.bf16.mxu0 0
          %898 = vmatpush1.bf16.msra.mxu0 0
          %899 = vmatprep.subr.bf16.mxu0 0
          %900 = vmatpush1.bf16.msra.mxu0 0
          %901 = vmatprep.subr.bf16.mxu0 0
          %902 = vmatpush1.bf16.msra.mxu0 0
          %903 = vmatprep.subr.bf16.mxu0 0
          %904 = vmatpush1.bf16.msra.mxu0 0
          %905 = vmatprep.subr.bf16.mxu0 0
          %906 = vmatpush1.bf16.msra.mxu0 0
          %907 = vmatprep.subr.bf16.mxu0 0
          %908 = vmatpush1.bf16.msra.mxu0 0
          %909 = vmatprep.mubr.bf16.mxu0 0
          %910 = vmatmul.mubr.bf16.gmra.mrb[0].mxu0 %v875
          %v911 = vpop.f32.mrb[0].mxu0
          %v912 = vadd.f32 0.0, %v911
          %v913 = vpop.f32.mrb[0].mxu0
          %v914 = vpop.f32.mrb[0].mxu0
          %v915 = vpop.f32.mrb[0].mxu0
          %916 = vdwg.mxu0
          %v917 = vld [vmem:[#allocation2] sm:$0x1]
          %v918 = vlaneseq
          %v919 = vshrl.u32 %v918, 7
          %v920 = vsub.s32 0, %v919
          %v921 = vrot.slane %v917, %v920
          %v922 = vmul.f32 %v912, %v921
          %v923 = vld [vmem:[#allocation2 + $0x1] sm:$0x1]
          %v924 = vlaneseq
          %v925 = vshrl.u32 %v924, 7
          %v926 = vsub.s32 0, %v925
          %v927 = vrot.slane %v923, %v926
          %v928 = vadd.f32 %v922, %v927
          %v929 = vmax.f32 %v928, 0.0
          %v930 = vpack.c.bf16 %v929, %v929
          %v931 = vld [vmem:[%s3] sm:$0xf]
          %v932 = vld [vmem:[%s3 + $0x4] sm:$0xf]
          %v933 = vld [vmem:[%s3 + $0x8] sm:$0xf]
          %v937 = vunpack.c.l.b16 %v931
          %v938 = vunpack.c.l.b16 %v932
          %v939 = vunpack.c.l.b16 %v933
          %v940 = vpack.c.b16 %v938, %v937
          %v941 = vpack.c.b16 %v939, %v939
          %vm943 = vcmask 195584
          %v945 = vsel %vm943, %v930, 0
          %vm947 = vcmask 1043456
          %v949 = vsel %vm947, %v941, 0
          %951 = vmatprep.subr.bf16.mxu0 0
          %952 = vmatpush1.bf16.msra.mxu0 %v940
          %953 = vmatprep.subr.bf16.mxu0 0
          %954 = vmatpush1.bf16.msra.mxu0 %v949
          %955 = vmatprep.subr.bf16.mxu0 0
          %956 = vmatpush1.bf16.msra.mxu0 0
          %957 = vmatprep.subr.bf16.mxu0 0
          %958 = vmatpush1.bf16.msra.mxu0 0
          %959 = vmatprep.subr.bf16.mxu0 0
          %960 = vmatpush1.bf16.msra.mxu0 0
          %961 = vmatprep.subr.bf16.mxu0 0
          %962 = vmatpush1.bf16.msra.mxu0 0
          %963 = vmatprep.subr.bf16.mxu0 0
          %964 = vmatpush1.bf16.msra.mxu0 0
          %965 = vmatprep.subr.bf16.mxu0 0
          %966 = vmatpush1.bf16.msra.mxu0 0
          %967 = vmatprep.subr.bf16.mxu0 0
          %968 = vmatpush1.bf16.msra.mxu0 0
          %969 = vmatprep.subr.bf16.mxu0 0
          %970 = vmatpush1.bf16.msra.mxu0 0
          %971 = vmatprep.subr.bf16.mxu0 0
          %972 = vmatpush1.bf16.msra.mxu0 0
          %973 = vmatprep.subr.bf16.mxu0 0
          %974 = vmatpush1.bf16.msra.mxu0 0
          %975 = vmatprep.subr.bf16.mxu0 0
          %976 = vmatpush1.bf16.msra.mxu0 0
          %977 = vmatprep.subr.bf16.mxu0 0
          %978 = vmatpush1.bf16.msra.mxu0 0
          %979 = vmatprep.subr.bf16.mxu0 0
          %980 = vmatpush1.bf16.msra.mxu0 0
          %981 = vmatprep.subr.bf16.mxu0 0
          %982 = vmatpush1.bf16.msra.mxu0 0
          %983 = vmatprep.mubr.bf16.mxu0 0
          %984 = vmatmul.mubr.bf16.gmra.mrb[0].mxu0 %v945
          %v985 = vpop.f32.mrb[0].mxu0
          %v986 = vadd.f32 0.0, %v985
          %v987 = vpop.f32.mrb[0].mxu0
          %v988 = vpop.f32.mrb[0].mxu0
          %v989 = vpop.f32.mrb[0].mxu0
          %990 = vdwg.mxu0
          %v991 = vld [vmem:[#allocation3] sm:$0x1]
          %v992 = vlaneseq
          %v993 = vshrl.u32 %v992, 7
          %v994 = vsub.s32 0, %v993
          %v995 = vrot.slane %v991, %v994
          %v996 = vmul.f32 %v986, %v995
          %v997 = vld [vmem:[#allocation3 + $0x1] sm:$0x1]
          %v998 = vlaneseq
          %v999 = vshrl.u32 %v998, 7
          %v1000 = vsub.s32 0, %v999
          %v1001 = vrot.slane %v997, %v1000
          %v1002 = vadd.f32 %v996, %v1001
          %v1003 = vmax.f32 %v1002, 0.0
          %v1004 = vpack.c.bf16 %v1003, %v1003
          %v1005 = vld [vmem:[%s5] sm:$0xf]
          %v1006 = vld [vmem:[%s5 + $0x4] sm:$0xf]
          %v1007 = vld [vmem:[%s6] sm:$0x1]
          %v1009 = vlaneseq
          %v1010 = vshrl.u32 %v1009, 7
          %v1011 = vsub.s32 0, %v1010
          %v1012 = vrot.slane %v1007, %v1011
          %v1016 = vunpack.c.l.b16 %v1005
          %v1017 = vunpack.c.l.b16 %v1006
          %v1018 = vpack.c.b16 %v1017, %v1016
          %vm1020 = vcmask 130048
          %v1022 = vsel %vm1020, %v1004, 0
          %1024 = vmatprep.subr.bf16.mxu0 0
          %1025 = vmatpush1.bf16.msra.mxu0 %v1018
          %1026 = vmatprep.subr.bf16.mxu0 0
          %1027 = vmatpush1.bf16.msra.mxu0 0
          %1028 = vmatprep.subr.bf16.mxu0 0
          %1029 = vmatpush1.bf16.msra.mxu0 0
          %1030 = vmatprep.subr.bf16.mxu0 0
          %1031 = vmatpush1.bf16.msra.mxu0 0
          %1032 = vmatprep.subr.bf16.mxu0 0
          %1033 = vmatpush1.bf16.msra.mxu0 0
          %1034 = vmatprep.subr.bf16.mxu0 0
          %1035 = vmatpush1.bf16.msra.mxu0 0
          %1036 = vmatprep.subr.bf16.mxu0 0
          %1037 = vmatpush1.bf16.msra.mxu0 0
          %1038 = vmatprep.subr.bf16.mxu0 0
          %1039 = vmatpush1.bf16.msra.mxu0 0
          %1040 = vmatprep.subr.bf16.mxu0 0
          %1041 = vmatpush1.bf16.msra.mxu0 0
          %1042 = vmatprep.subr.bf16.mxu0 0
          %1043 = vmatpush1.bf16.msra.mxu0 0
          %1044 = vmatprep.subr.bf16.mxu0 0
          %1045 = vmatpush1.bf16.msra.mxu0 0
          %1046 = vmatprep.subr.bf16.mxu0 0
          %1047 = vmatpush1.bf16.msra.mxu0 0
          %1048 = vmatprep.subr.bf16.mxu0 0
          %1049 = vmatpush1.bf16.msra.mxu0 0
          %1050 = vmatprep.subr.bf16.mxu0 0
          %1051 = vmatpush1.bf16.msra.mxu0 0
          %1052 = vmatprep.subr.bf16.mxu0 0
          %1053 = vmatpush1.bf16.msra.mxu0 0
          %1054 = vmatprep.subr.bf16.mxu0 0
          %1055 = vmatpush1.bf16.msra.mxu0 0
          %1056 = vmatprep.mubr.bf16.mxu0 0
          %1057 = vmatmul.mubr.bf16.gmra.mrb[0].mxu0 %v1022
          %v1058 = vpop.f32.mrb[0].mxu0
          %v1059 = vadd.f32 %v1012, %v1058
          %v1060 = vpop.f32.mrb[0].mxu0
          %v1061 = vpop.f32.mrb[0].mxu0
          %v1062 = vpop.f32.mrb[0].mxu0
          %1063 = vdwg.mxu0
          %v1064 = vxor.u32 %v1059, 2147483648
          %v1065 = vmul.f32 %v1064, 1.442695
          %v1066 = vpow.pop %v1065
          %v1067 = vadd.f32 %v1066, 1.0
          %v1068 = vrcp.pop %v1067
          %v1069 = vmul.f32 1.0, %v1068
          %1070 = vst.msk [vmem:[%s285] sm:$0xff] %vm1020, %v1069
        $region76: #{tpu_custom_call.1} parent=47 // pred_fallthru
          _
        %s1071 = sand.u32 %s197, 1
        %s1072 = scalar_lea.sflag [#allocation5], %s1071
        %s1073 = sand.u32 %s197, 1
        %s1074 = smul.addr %s1073, 8
        %s1075 = scalar_lea.vmem [#allocation4], %s1074
        // Predicated region
        $region77: #{tpu_custom_call.1} parent=47 // pred_check
          %p1076 = pneg %p207
        $region78: #{tpu_custom_call.1} parent=47 // pred_check_branch
          %1078 = sbr.rel (%p1076) target = $region80
        $region79: #{tpu_custom_call.1} parent=47 // pred_region
          %p1079 = scmp.eq.s32.totalorder %s25, 2
          %s1080 = scalar_select %p1079, %s26, 0
          %s1082 = ssub.s32 128, 128
          %1083 = vsyncadd %s1072, %s1082
          %s1084 = smul.addr %s1080, 128
          %s1085 = scalar_lea.hbm %s7, %s1084
          %s1087 = sshll.u32 %s1075, 4
          %s1088 = int_to_ptr.vmem [resolvable:$true] %s1087
          %1090 = dma.vmem_to_hbm [thread:$0]  %s1088, 128, %s1085, %s1072
        $region80: #{tpu_custom_call.1} parent=47 // pred_fallthru
          _
      $region48: #{tpu_custom_call.1} parent=5 // pred_fallthru
        _
      %p1091 = scmp.le.s32.totalorder 2, %s16
      // Predicated region
      $region81: #{tpu_custom_call.1} parent=5 // pred_check
        %p1092 = pneg %p1091
      $region82: #{tpu_custom_call.1} parent=5 // pred_check_branch
        %1094 = sbr.rel (%p1092) target = $region84
      $region83: #{tpu_custom_call.1} parent=5 // pred_region
        %s1095 = ssub.s32 %s16, 2
        // Predicated region
        $region85: #{tpu_custom_call.1} parent=83 // pred_check
          %p1096 = pneg %p213
        $region86: #{tpu_custom_call.1} parent=83 // pred_check_branch
          %1098 = sbr.rel (%p1096) target = $region88
        $region87: #{tpu_custom_call.1} parent=83 // pred_region
          %s1099 = sand.u32 %s198, 1
          %s1100 = scalar_lea.sflag [#allocation5], %s1099
          %s1101 = sand.u32 %s198, 1
          %s1102 = smul.addr %s1101, 8
          %s1103 = scalar_lea.vmem [#allocation4], %s1102
          %1104 = dma.done %s1100, 128
        $region88: #{tpu_custom_call.1} parent=83 // pred_fallthru
          _
      $region84: #{tpu_custom_call.1} parent=5 // pred_fallthru
        _
    $region6: #{tpu_custom_call.1} parent=1 // loop_footer
      %s20 = sadd.s32 1, %s16
    $region7: #{tpu_custom_call.1} parent=1 // loop_footer_branch
      %15 = sbr.rel target = $region3
    $region8: #{tpu_custom_call.1} parent=1 // loop_exit
      _
    %1105 = vsyncpa [#allocation5], 1
    %s1106 = scalar_lea.sflag [#allocation5], 1
    %1107 = vsyncpa %s1106, 1

</llo_original>
